<compile_context>
chip_gen: v5e
topology: v5e:2x2
jax: 0.10.0
libtpu: 0.0.40
codegen_flags: <defaults>
</compile_context>

<pallas_src>
import numpy as np
import jax
import jax.numpy as jnp
from jax import lax
from jax.experimental import pallas as pl
from jax.experimental.pallas import tpu as pltpu

_BINOMIAL = {
    1: [1.0],
    2: [1.0, 1.0],
    3: [1.0, 2.0, 1.0],
    4: [1.0, 3.0, 3.0, 1.0],
    5: [1.0, 4.0, 6.0, 4.0, 1.0],
    6: [1.0, 5.0, 10.0, 10.0, 5.0, 1.0],
    7: [1.0, 6.0, 15.0, 20.0, 15.0, 6.0, 1.0],
}

_PAD_MODE = {"reflect": "reflect", "refl": "reflect",
             "replicate": "edge", "repl": "edge", "zero": "zero"}


def _cdiv(a, b):
    return -(-a // b)


def _map_index(q, n, mode):
    """Map a (possibly out-of-range) source index to a valid one, per pad mode.
    Returns None when the tap contributes nothing (zero padding)."""
    if 0 <= q < n:
        return q
    if mode == "zero":
        return None
    if mode == "edge":                       # ReplicationPad2d
        return min(max(q, 0), n - 1)
    # reflect (no edge repeat); matches ReflectionPad2d for pad < dim.
    if n == 1:
        return 0
    period = 2 * (n - 1)
    q = q % period
    if q >= n:
        q = period - q
    return q


def _down_matrix(n, n_out, taps, stride, pad_l, mode):
    """(n, n_out) matrix: strided 1-D binomial filtering with padding folded in."""
    A = np.zeros((n, n_out), np.float64)
    for io in range(n_out):
        for t, w in enumerate(taps):
            q = io * stride + t - pad_l      # source index in UNPADDED coords
            qi = _map_index(q, n, mode)
            if qi is not None:
                A[qi, io] += w
    return A.astype(np.float32)


def _pick_tb(nc, h, w, ho, wo, itemsize, budget_bytes=36 * 1024 * 1024):
    """Images per grid step from a VMEM budget (2x in + 2x out blocks + f32
    temps), keeping >= 4 grid steps when possible and 8-aligned sublane dims."""
    per_img = (2 * h * w * itemsize            # double-buffered input block
               + 2 * ho * wo * itemsize        # double-buffered output block
               + 4 * (2 * h * wo + 2 * ho * wo))  # f32 temps (t/u + relayouts)
    tb = max(1, budget_bytes // max(1, per_img))
    if nc >= 4:                                # >= 2 steps per v7x TensorCore
        tb = min(tb, _cdiv(nc, 4))
    elif nc >= 2:
        tb = min(tb, _cdiv(nc, 2))
    tb = max(1, min(tb, nc))
    # (8,128) rule: block sublane extents TB*H and TB*Ho must be multiples of 8
    # (blocks equal to the full array dim are exempt).
    m = int(np.lcm(8 // int(np.gcd(h, 8)), 8 // int(np.gcd(ho, 8))))
    if nc <= m:
        return nc
    tb = m if tb < m else (tb // m) * m
    return min(tb, nc)


def _make_kernel(tb, wide, precision):
    def kernel(aht_ref, aw_ref, x_ref, o_ref):
        ho, h = aht_ref.shape
        _, wo = aw_ref.shape
        x = x_ref[...]                                         # (tb*h, w)
        # W-contraction: one wide MXU matmul with f32 accumulation.
        t = jnp.dot(x, aw_ref[...], preferred_element_type=jnp.float32,
                    precision=precision)                       # (tb*h, wo)
        aht = aht_ref[...]                                     # (ho, h) f32
        if wide:
            # Relayout (tb, h, wo) -> (h, tb*wo) so the H-contraction is ONE
            # lane-dense matmul and the result is ONE full-block store.
            tw = jnp.swapaxes(t.reshape(tb, h, wo), 0, 1).reshape(h, tb * wo)
            u = jnp.dot(aht, tw, preferred_element_type=jnp.float32,
                        precision=precision)                   # (ho, tb*wo)
            y = jnp.swapaxes(u.reshape(ho, tb, wo), 0, 1).reshape(tb * ho, wo)
            o_ref[...] = y.astype(o_ref.dtype)
        else:
            # Conservative per-image fallback (only used with small tb).
            for b in range(tb):
                yb = jnp.dot(aht, t[b * h:(b + 1) * h, :],
                             preferred_element_type=jnp.float32,
                             precision=precision)
                o_ref[b * ho:(b + 1) * ho, :] = yb.astype(o_ref.dtype)
    return kernel


def _blurpool_pallas(xf, aht, aw, ho, wo, tb, wide, precision):
    ho_, h = aht.shape
    w, wo_ = aw.shape
    nc = xf.shape[0] // h
    steps = _cdiv(nc, tb)
    itemsize = np.dtype(xf.dtype).itemsize
    flops = int(2 * nc * h * wo * (w + ho))
    bytes_accessed = int((xf.size + nc * ho * wo) * itemsize
                         + (aht.size + aw.size) * 4)
    return pl.pallas_call(
        _make_kernel(tb, wide, precision),
        out_shape=jax.ShapeDtypeStruct((nc * ho, wo), xf.dtype),
        grid_spec=pltpu.PrefetchScalarGridSpec(
            num_scalar_prefetch=0,
            grid=(steps,),
            in_specs=[
                # Constant block index -> filter matrices are DMA'd exactly once.
                pl.BlockSpec((ho, h), lambda i: (0, 0)),
                pl.BlockSpec((w, wo), lambda i: (0, 0)),
                # TB consecutive images per step as one contiguous 2-D block.
                pl.BlockSpec((tb * h, w), lambda i: (i, 0)),
            ],
            out_specs=pl.BlockSpec((tb * ho, wo), lambda i: (i, 0)),
        ),
        compiler_params=pltpu.CompilerParams(
            dimension_semantics=("parallel",),
            vmem_limit_bytes=48 * 1024 * 1024),
        cost_estimate=pl.CostEstimate(flops=flops, transcendentals=0,
                                      bytes_accessed=bytes_accessed),
    )(aht, aw, xf)


def blur_pool(x, *, filt_size=3, stride=2, pad_type="reflect", pad_off=0,
              precision=lax.Precision.HIGHEST):
    """Equivalent of BlurPool.forward for NCHW float input."""
    N, C, H, W = x.shape
    pad_l = (filt_size - 1) // 2 + pad_off
    pad_r = int(np.ceil((filt_size - 1) / 2.0)) + pad_off
    mode = _PAD_MODE[pad_type]

    if filt_size == 1:
        # Pure subsampling branch of the module (no conv hot path).
        if pad_off == 0:
            return x[:, :, ::stride, ::stride]
        jmode = "constant" if mode == "zero" else mode
        xp = jnp.pad(x, ((0, 0), (0, 0), (pad_l, pad_r), (pad_l, pad_r)), mode=jmode)
        return xp[:, :, ::stride, ::stride]

    Ho = (H + pad_l + pad_r - filt_size) // stride + 1
    Wo = (W + pad_l + pad_r - filt_size) // stride + 1

    a = np.asarray(_BINOMIAL[filt_size], dtype=np.float64)
    f1 = a / a.sum()

    # Padding is folded into these matrices -> kernel reads the raw input.
    aht = jnp.asarray(_down_matrix(H, Ho, f1, stride, pad_l, mode).T)  # (Ho,H) f32
    # Aw in the input dtype: bf16 inputs hit the MXU at native bf16 rate
    # (all folded taps are exact dyadic fractions, so no accuracy loss).
    aw = jnp.asarray(_down_matrix(W, Wo, f1, stride, pad_l, mode), dtype=x.dtype)

    NC = N * C
    xf = x.reshape(NC * H, W)              # free metadata reshape (contiguous)
    tb = _pick_tb(NC, H, W, Ho, Wo, np.dtype(x.dtype).itemsize)

    try:
        out = _blurpool_pallas(xf, aht, aw, Ho, Wo, tb, True, precision)
    except Exception:
        # Some Mosaic versions reject the in-kernel relayout of the wide
        # H-contraction; fall back to a small-batch per-image variant.
        out = _blurpool_pallas(xf, aht, aw, Ho, Wo, min(tb, 16), False, precision)
    return out.reshape(N, C, Ho, Wo)


def _reference(x, filt_size, stride, pad_type, pad_off=0):
    """Pure-JAX reference: F.conv2d(pad(x), filt, stride, groups=C)."""
    pad_l = (filt_size - 1) // 2 + pad_off
    pad_r = int(np.ceil((filt_size - 1) / 2.0)) + pad_off
    jmode = {"reflect": "reflect", "refl": "reflect",
             "replicate": "edge", "repl": "edge", "zero": "constant"}[pad_type]
    a = jnp.asarray(_BINOMIAL[filt_size], dtype=jnp.float32)
    filt2d = jnp.outer(a, a)
    filt2d = filt2d / jnp.sum(filt2d)
    xp = jnp.pad(x, ((0, 0), (0, 0), (pad_l, pad_r), (pad_l, pad_r)), mode=jmode)
    Hp, Wp = x.shape[2] + pad_l + pad_r, x.shape[3] + pad_l + pad_r
    Ho = (Hp - filt_size) // stride + 1
    Wo = (Wp - filt_size) // stride + 1
    ref = jnp.zeros(x.shape[:2] + (Ho, Wo), x.dtype)
    for u in range(filt_size):
        for v in range(filt_size):
            ref = ref + filt2d[u, v] * xp[:, :, u:u + stride * Ho:stride,
                                          v:v + stride * Wo:stride]
    return ref


if __name__ == "__main__":
    key = jax.random.PRNGKey(0)
    x = jax.random.normal(key, (2, 4, 16, 16), dtype=jnp.float32)

    # Default module config: reflect pad, filt_size=3, stride=2.
    out = jax.block_until_ready(blur_pool(x))
    assert out.shape == (2, 4, 8, 8), out.shape
    ref = _reference(x, 3, 2, "reflect")
    assert jnp.allclose(out, ref, atol=1e-5, rtol=1e-5), \
        float(jnp.max(jnp.abs(out - ref)))

    # Other filter size / zero padding.
    out5 = jax.block_until_ready(blur_pool(x, filt_size=5, pad_type="zero"))
    ref5 = _reference(x, 5, 2, "zero")
    assert jnp.allclose(out5, ref5, atol=1e-5, rtol=1e-5), \
        float(jnp.max(jnp.abs(out5 - ref5)))

    # Non-divisible NC exercises the masked partial final grid block.
    x3 = jax.random.normal(jax.random.PRNGKey(1), (1, 3, 16, 16), dtype=jnp.float32)
    out3 = jax.block_until_ready(blur_pool(x3, pad_type="replicate"))
    ref3 = _reference(x3, 3, 2, "replicate")
    assert jnp.allclose(out3, ref3, atol=1e-5, rtol=1e-5), \
        float(jnp.max(jnp.abs(out3 - ref3)))

    print("KERNEL_OK")
</pallas_src>

<mosaic_0001>
module attributes {stable_mosaic.version = 11 : i64} {
  func.func @kernel(%arg0: i32, %arg1: memref<8x16xf32, #tpu.memory_space<vmem>>, %arg2: memref<16x8xf32, #tpu.memory_space<vmem>>, %arg3: memref<32x16xf32, #tpu.memory_space<vmem>>, %arg4: memref<16x8xf32, #tpu.memory_space<vmem>>) attributes {dimension_semantics = [#tpu.dimension_semantics<parallel>], iteration_bounds = array<i64: 4>, scalar_prefetch = 0 : i64, scratch_operands = 0 : i64, tpu.core_type = #tpu.core_type<tc>, window_params = [{pipeline_mode = #tpu.pipeline_mode<synchronous>, transform_indices = @transform_0, window_bounds = array<i64: 8, 16>}, {pipeline_mode = #tpu.pipeline_mode<synchronous>, transform_indices = @transform_1, window_bounds = array<i64: 16, 8>}, {transform_indices = @transform_2, window_bounds = array<i64: 32, 16>}, {transform_indices = @transform_3, window_bounds = array<i64: 16, 8>}]} {
    %c0 = arith.constant 0 : index
    %c0_0 = arith.constant 0 : index
    %0 = vector.load %arg3[%c0, %c0_0] : memref<32x16xf32, #tpu.memory_space<vmem>>, vector<32x16xf32>
    %c0_1 = arith.constant 0 : index
    %c0_2 = arith.constant 0 : index
    %1 = vector.load %arg2[%c0_1, %c0_2] : memref<16x8xf32, #tpu.memory_space<vmem>>, vector<16x8xf32>
    %cst = arith.constant dense<0.000000e+00> : vector<32x8xf32>
    %2 = tpu.matmul %0, %1, %cst {dimension_numbers = #tpu.dot_dimension_numbers<[1], [0], [0], [1], [0, 0, 1, 1], [], []>, precision = #tpu.contract_precision<fp32>} : vector<32x16xf32>, vector<16x8xf32>, vector<32x8xf32> -> vector<32x8xf32>
    %c0_3 = arith.constant 0 : index
    %c0_4 = arith.constant 0 : index
    %3 = vector.load %arg1[%c0_3, %c0_4] : memref<8x16xf32, #tpu.memory_space<vmem>>, vector<8x16xf32>
    %4 = vector.shape_cast %2 : vector<32x8xf32> to vector<2x16x8xf32>
    %5 = tpu.transpose %4, [1, 0, 2] : vector<2x16x8xf32> -> vector<16x2x8xf32>
    %6 = vector.shape_cast %5 : vector<16x2x8xf32> to vector<16x16xf32>
    %cst_5 = arith.constant dense<0.000000e+00> : vector<8x16xf32>
    %7 = tpu.matmul %3, %6, %cst_5 {dimension_numbers = #tpu.dot_dimension_numbers<[1], [0], [0], [1], [0, 0, 1, 1], [], []>, precision = #tpu.contract_precision<fp32>} : vector<8x16xf32>, vector<16x16xf32>, vector<8x16xf32> -> vector<8x16xf32>
    %8 = vector.shape_cast %7 : vector<8x16xf32> to vector<8x2x8xf32>
    %9 = tpu.transpose %8, [1, 0, 2] : vector<8x2x8xf32> -> vector<2x8x8xf32>
    %10 = vector.shape_cast %9 : vector<2x8x8xf32> to vector<16x8xf32>
    %c0_6 = arith.constant 0 : index
    %c0_7 = arith.constant 0 : index
    %11 = vector.load %arg4[%c0_6, %c0_7] : memref<16x8xf32, #tpu.memory_space<vmem>>, vector<16x8xf32>
    tpu.vector_store %arg4[%c0_6, %c0_7], %10 {strides = array<i32>} : memref<16x8xf32, #tpu.memory_space<vmem>>, vector<16x8xf32>,
    return
  }
  func.func @transform_0(%arg0: i32) -> (i32, i32) {
    %c0_i32 = arith.constant 0 : i32
    %c0_i32_0 = arith.constant 0 : i32
    %c0_i32_1 = arith.constant 0 : i32
    return %c0_i32, %c0_i32_0 : i32, i32
  }
  func.func @transform_1(%arg0: i32) -> (i32, i32) {
    %c0_i32 = arith.constant 0 : i32
    %c0_i32_0 = arith.constant 0 : i32
    %c0_i32_1 = arith.constant 0 : i32
    return %c0_i32, %c0_i32_0 : i32, i32
  }
  func.func @transform_2(%arg0: i32) -> (i32, i32) {
    %c0_i32 = arith.constant 0 : i32
    %c0_i32_0 = arith.constant 0 : i32
    return %arg0, %c0_i32 : i32, i32
  }
  func.func @transform_3(%arg0: i32) -> (i32, i32) {
    %c0_i32 = arith.constant 0 : i32
    %c0_i32_0 = arith.constant 0 : i32
    return %arg0, %c0_i32 : i32, i32
  }
}

module attributes {stable_mosaic.version = 11 : i64} {
  func.func @kernel(%arg0: i32, %arg1: memref<8x16xf32, #tpu.memory_space<vmem>>, %arg2: memref<16x8xf32, #tpu.memory_space<vmem>>, %arg3: memref<32x16xf32, #tpu.memory_space<vmem>>, %arg4: memref<16x8xf32, #tpu.memory_space<vmem>>) attributes {dimension_semantics = [#tpu.dimension_semantics<parallel>], iteration_bounds = array<i64: 4>, scalar_prefetch = 0 : i64, scratch_operands = 0 : i64, tpu.core_type = #tpu.core_type<tc>, window_params = [{pipeline_mode = #tpu.pipeline_mode<synchronous>, transform_indices = @transform_0, window_bounds = array<i64: 8, 16>}, {pipeline_mode = #tpu.pipeline_mode<synchronous>, transform_indices = @transform_1, window_bounds = array<i64: 16, 8>}, {transform_indices = @transform_2, window_bounds = array<i64: 32, 16>}, {transform_indices = @transform_3, window_bounds = array<i64: 16, 8>}]} {
    %c0 = arith.constant 0 : index
    %c0_0 = arith.constant 0 : index
    %0 = vector.load %arg3[%c0, %c0_0] : memref<32x16xf32, #tpu.memory_space<vmem>>, vector<32x16xf32>
    %c0_1 = arith.constant 0 : index
    %c0_2 = arith.constant 0 : index
    %1 = vector.load %arg2[%c0_1, %c0_2] : memref<16x8xf32, #tpu.memory_space<vmem>>, vector<16x8xf32>
    %cst = arith.constant dense<0.000000e+00> : vector<32x8xf32>
    %2 = tpu.matmul %0, %1, %cst {dimension_numbers = #tpu.dot_dimension_numbers<[1], [0], [0], [1], [0, 0, 1, 1], [], []>, precision = #tpu.contract_precision<fp32>} : vector<32x16xf32>, vector<16x8xf32>, vector<32x8xf32> -> vector<32x8xf32>
    %c0_3 = arith.constant 0 : index
    %c0_4 = arith.constant 0 : index
    %3 = vector.load %arg1[%c0_3, %c0_4] : memref<8x16xf32, #tpu.memory_space<vmem>>, vector<8x16xf32>
    %4 = vector.extract_strided_slice %2 {offsets = [0, 0], sizes = [16, 8], strides = [1, 1]} : vector<32x8xf32> to vector<16x8xf32>
    %cst_5 = arith.constant dense<0.000000e+00> : vector<8x8xf32>
    %5 = tpu.matmul %3, %4, %cst_5 {dimension_numbers = #tpu.dot_dimension_numbers<[1], [0], [0], [1], [0, 0, 1, 1], [], []>, precision = #tpu.contract_precision<fp32>} : vector<8x16xf32>, vector<16x8xf32>, vector<8x8xf32> -> vector<8x8xf32>
    %c0_6 = arith.constant 0 : index
    %c0_7 = arith.constant 0 : index
    %6 = vector.load %arg4[%c0_6, %c0_7] : memref<16x8xf32, #tpu.memory_space<vmem>>, vector<8x8xf32>
    tpu.vector_store %arg4[%c0_6, %c0_7], %5 {strides = array<i32>} : memref<16x8xf32, #tpu.memory_space<vmem>>, vector<8x8xf32>,
    %7 = vector.extract_strided_slice %2 {offsets = [16, 0], sizes = [16, 8], strides = [1, 1]} : vector<32x8xf32> to vector<16x8xf32>
    %cst_8 = arith.constant dense<0.000000e+00> : vector<8x8xf32>
    %8 = tpu.matmul %3, %7, %cst_8 {dimension_numbers = #tpu.dot_dimension_numbers<[1], [0], [0], [1], [0, 0, 1, 1], [], []>, precision = #tpu.contract_precision<fp32>} : vector<8x16xf32>, vector<16x8xf32>, vector<8x8xf32> -> vector<8x8xf32>
    %c8 = arith.constant 8 : index
    %c0_9 = arith.constant 0 : index
    %9 = vector.load %arg4[%c8, %c0_9] : memref<16x8xf32, #tpu.memory_space<vmem>>, vector<8x8xf32>
    tpu.vector_store %arg4[%c8, %c0_9], %8 {strides = array<i32>} : memref<16x8xf32, #tpu.memory_space<vmem>>, vector<8x8xf32>,
    return
  }
  func.func @transform_0(%arg0: i32) -> (i32, i32) {
    %c0_i32 = arith.constant 0 : i32
    %c0_i32_0 = arith.constant 0 : i32
    %c0_i32_1 = arith.constant 0 : i32
    return %c0_i32, %c0_i32_0 : i32, i32
  }
  func.func @transform_1(%arg0: i32) -> (i32, i32) {
    %c0_i32 = arith.constant 0 : i32
    %c0_i32_0 = arith.constant 0 : i32
    %c0_i32_1 = arith.constant 0 : i32
    return %c0_i32, %c0_i32_0 : i32, i32
  }
  func.func @transform_2(%arg0: i32) -> (i32, i32) {
    %c0_i32 = arith.constant 0 : i32
    %c0_i32_0 = arith.constant 0 : i32
    return %arg0, %c0_i32 : i32, i32
  }
  func.func @transform_3(%arg0: i32) -> (i32, i32) {
    %c0_i32 = arith.constant 0 : i32
    %c0_i32_0 = arith.constant 0 : i32
    return %arg0, %c0_i32 : i32, i32
  }
}

</mosaic_0001>

<llo_original>
// kernel: tpu_custom_call.1
$region0: #{tpu_custom_call.1}
  #allocation0 [shape = 'u32[]', space=smem, size = 0x4, offset = 0x4, fixed_abs, tag = 'smem constant byte address 0x4 - core index']
  #allocation1 [shape = 'u32[72,128]{1,0:T(1,128)}', space=vmem, size = 0x9000, scoped, tag = 'internal scratch']
  %s0 = inlined_call_operand.vmem [shape: f32[8,16], index: 0, kind: input, shape index: {}]
  %s1 = inlined_call_operand.vmem [shape: f32[16,8], index: 1, kind: input, shape index: {}]
  %s2 = inlined_call_operand.vmem [shape: f32[128,16], index: 2, kind: input, shape index: {}]
  %s3 = inlined_call_operand.vmem [shape: f32[64,8], index: 3, kind: output, shape index: {}]
  %s4 = sld [smem:[#allocation0]]
  $region45: #{tpu_custom_call.1} parent=0
    _
  %s6 = ssub.s32 1, %s4
  %s7 = scalar_select 0, %s6, %s4
  loop: start=0, step=1, limit=6
  $region2: #{tpu_custom_call.1} parent=0 // loop_pre_header
    _
  $region3: #{tpu_custom_call.1} parent=0 // loop_header
    %s9 = sphi 0, %s13
    %p10 = scmp.ge.s32.totalorder %s9, 6
    %s17 = sphi 0, %s17
    %s19 = sphi 0, %s17
    %s20 = sphi 0, %s19
    %s34 = sphi 0, %s20
    %s38 = sphi 0, %s38
    %s40 = sphi 0, %s38
    %s41 = sphi 0, %s40
    %s55 = sphi 0, %s41
    %s61 = sphi 0, %s63
    %s64 = sphi 0, %s61
    %s65 = sphi 0, %s64
    %s81 = sphi 0, %s65
    %s87 = sphi 0, %s89
    %s90 = sphi 0, %s87
    %s91 = sphi 0, %s90
    %s107 = sphi 0, %s91
  $region4: #{tpu_custom_call.1} parent=0 // loop_header_branch
    %12 = sbr.rel (%p10) target = $region8
  $region5: #{tpu_custom_call.1} parent=0 // loop_body
    %s14 = ssub.s32 %s9, 1
    %s15 = ssub.s32 %s9, 2
    %s16 = sadd.s32 %s9, 1
    %s18 = sadd.s32 %s17, 1
    %p21 = scmp.eq.s32.totalorder %s9, 3
    %p22 = scmp.ne.s32.totalorder %s17, %s19
    %p23 = scmp.eq.s32.totalorder %s9, 0
    %p24 = por %p22, %p23
    %p25 = scmp.ne.s32.totalorder %s17, %s19
    %p26 = scmp.eq.s32.totalorder %s14, 3
    %p27 = por %p25, %p26
    %p28 = scmp.ne.s32.totalorder %s19, %s20
    %p29 = scmp.eq.s32.totalorder %s14, 0
    %p30 = por %p28, %p29
    %p31 = scmp.ne.s32.totalorder %s19, %s20
    %p32 = scmp.eq.s32.totalorder %s15, 3
    %p33 = por %p31, %p32
    %p35 = scmp.ne.s32.totalorder %s20, %s34
    %p36 = scmp.eq.s32.totalorder %s15, 0
    %p37 = por %p35, %p36
    %s39 = sadd.s32 %s38, 1
    %p42 = scmp.eq.s32.totalorder %s9, 3
    %p43 = scmp.ne.s32.totalorder %s38, %s40
    %p44 = scmp.eq.s32.totalorder %s9, 0
    %p45 = por %p43, %p44
    %p46 = scmp.ne.s32.totalorder %s38, %s40
    %p47 = scmp.eq.s32.totalorder %s14, 3
    %p48 = por %p46, %p47
    %p49 = scmp.ne.s32.totalorder %s40, %s41
    %p50 = scmp.eq.s32.totalorder %s14, 0
    %p51 = por %p49, %p50
    %p52 = scmp.ne.s32.totalorder %s40, %s41
    %p53 = scmp.eq.s32.totalorder %s15, 3
    %p54 = por %p52, %p53
    %p56 = scmp.ne.s32.totalorder %s41, %s55
    %p57 = scmp.eq.s32.totalorder %s15, 0
    %p58 = por %p56, %p57
    %s59 = ssub.s32 %s9, %s16
    %p60 = scmp.eq.s32.totalorder %s59, 0
    %s62 = sadd.s32 %s61, 1
    %s63 = scalar_select %p60, %s61, %s62
    %p66 = pneg %p60
    %p67 = scmp.eq.s32.totalorder %s9, 3
    %p68 = por %p66, %p67
    %p69 = scmp.ne.s32.totalorder %s61, %s64
    %p70 = scmp.eq.s32.totalorder %s9, 0
    %p71 = por %p69, %p70
    %p72 = scmp.ne.s32.totalorder %s61, %s64
    %p73 = scmp.eq.s32.totalorder %s14, 3
    %p74 = por %p72, %p73
    %p75 = scmp.ne.s32.totalorder %s64, %s65
    %p76 = scmp.eq.s32.totalorder %s14, 0
    %p77 = por %p75, %p76
    %p78 = scmp.ne.s32.totalorder %s64, %s65
    %p79 = scmp.eq.s32.totalorder %s15, 3
    %p80 = por %p78, %p79
    %p82 = scmp.ne.s32.totalorder %s65, %s81
    %p83 = scmp.eq.s32.totalorder %s15, 0
    %p84 = por %p82, %p83
    %s85 = ssub.s32 %s9, %s16
    %p86 = scmp.eq.s32.totalorder %s85, 0
    %s88 = sadd.s32 %s87, 1
    %s89 = scalar_select %p86, %s87, %s88
    %p92 = pneg %p86
    %p93 = scmp.eq.s32.totalorder %s9, 3
    %p94 = por %p92, %p93
    %p95 = scmp.ne.s32.totalorder %s87, %s90
    %p96 = scmp.eq.s32.totalorder %s9, 0
    %p97 = por %p95, %p96
    %p98 = scmp.ne.s32.totalorder %s87, %s90
    %p99 = scmp.eq.s32.totalorder %s14, 3
    %p100 = por %p98, %p99
    %p101 = scmp.ne.s32.totalorder %s90, %s91
    %p102 = scmp.eq.s32.totalorder %s14, 0
    %p103 = por %p101, %p102
    %p104 = scmp.ne.s32.totalorder %s90, %s91
    %p105 = scmp.eq.s32.totalorder %s15, 3
    %p106 = por %p104, %p105
    %p108 = scmp.ne.s32.totalorder %s91, %s107
    %p109 = scmp.eq.s32.totalorder %s15, 0
    %p110 = por %p108, %p109
    %p111 = scmp.le.s32.totalorder 1, %s9
    %p112 = scmp.lt.s32.totalorder %s9, 5
    %p113 = pnand %p111, %p112
    %p114 = pneg %p113
    // Predicated region
    $region9: #{tpu_custom_call.1} parent=5 // pred_check
      _
    $region10: #{tpu_custom_call.1} parent=5 // pred_check_branch
      %116 = sbr.rel (%p113) target = $region12
    $region11: #{tpu_custom_call.1} parent=5 // pred_region
      %s117 = ssub.s32 %s9, 1
      // Predicated region
      $region13: #{tpu_custom_call.1} parent=11 // pred_check
        %p118 = pneg %p30
      $region14: #{tpu_custom_call.1} parent=11 // pred_check_branch
        %120 = sbr.rel (%p118) target = $region16
      $region15: #{tpu_custom_call.1} parent=11 // pred_region
        _
      $region16: #{tpu_custom_call.1} parent=11 // pred_fallthru
        _
      // Predicated region
      $region17: #{tpu_custom_call.1} parent=11 // pred_check
        %p121 = pneg %p51
      $region18: #{tpu_custom_call.1} parent=11 // pred_check_branch
        %123 = sbr.rel (%p121) target = $region20
      $region19: #{tpu_custom_call.1} parent=11 // pred_region
        _
      $region20: #{tpu_custom_call.1} parent=11 // pred_fallthru
        _
    $region12: #{tpu_custom_call.1} parent=5 // pred_fallthru
      _
    %p124 = scmp.lt.s32.totalorder %s9, 4
    // Predicated region
    $region21: #{tpu_custom_call.1} parent=5 // pred_check
      %p125 = pneg %p124
    $region22: #{tpu_custom_call.1} parent=5 // pred_check_branch
      %127 = sbr.rel (%p125) target = $region24
    $region23: #{tpu_custom_call.1} parent=5 // pred_region
      // Predicated region
      $region25: #{tpu_custom_call.1} parent=23 // pred_check
        %p128 = pneg %p71
      $region26: #{tpu_custom_call.1} parent=23 // pred_check_branch
        %130 = sbr.rel (%p128) target = $region28
      $region27: #{tpu_custom_call.1} parent=23 // pred_region
        %s131 = smul.u32 4, %s9
        %p132 = scmp.lt.s32.totalorder %s131, 15
        %s133 = scalar_select %p132, %s131, 15
        %s134 = smul.addr %s133, 8
        %s135 = scalar_lea.vmem %s2, %s134
        %s136 = smul.u32 4, %s9
      $region28: #{tpu_custom_call.1} parent=23 // pred_fallthru
        _
    $region24: #{tpu_custom_call.1} parent=5 // pred_fallthru
      _
    %p137 = scmp.le.s32.totalorder 1, %s9
    %p138 = scmp.lt.s32.totalorder %s9, 5
    %p139 = pnand %p137, %p138
    %p140 = pneg %p139
    // Predicated region
    $region29: #{tpu_custom_call.1} parent=5 // pred_check
      _
    $region30: #{tpu_custom_call.1} parent=5 // pred_check_branch
      %142 = sbr.rel (%p139) target = $region32
    $region31: #{tpu_custom_call.1} parent=5 // pred_region
      %s143 = ssub.s32 %s9, 1
      %p144 = pneg %p30
      %p145 = pneg %p27
      %p146 = pneg %p51
      %p147 = pneg %p48
      %s148 = smul.u32 4, %s14
      %p149 = scmp.lt.s32.totalorder %s148, 15
      %s150 = scalar_select %p149, %s148, 15
      %s151 = smul.addr %s150, 8
      %s152 = scalar_lea.vmem %s2, %s151
      %p153 = pneg %p77
      %p154 = pneg %p74
      %p155 = pneg %p103
      %p156 = pneg %p100
      %s157 = smul.u32 2, %s14
      %p158 = scmp.lt.s32.totalorder %s157, 7
      %s159 = scalar_select %p158, %s157, 7
      %s160 = smul.addr %s159, 8
      %s161 = scalar_lea.vmem %s3, %s160
      %s162 = smul.u32 4, %s14
      %p163 = scmp.lt.s32.totalorder %s162, 15
      %s164 = scalar_select %p163, %s162, 15
      %s165 = smul.addr %s164, 8
      %s166 = scalar_lea.vmem %s2, %s165
      %s167 = smul.u32 4, %s14
      %s168 = smul.u32 2, %s14
      %p169 = scmp.lt.s32.totalorder %s168, 7
      %s170 = scalar_select %p169, %s168, 7
      %s171 = smul.addr %s170, 8
      %s172 = scalar_lea.vmem %s3, %s171
      %s173 = smul.u32 2, %s14
      %v174 = vld [vmem:[%s166] sm:$0xff]
      %v175 = vld [vmem:[%s166 + $0x8] sm:$0xff]
      %v176 = vld [vmem:[%s166 + $0x10] sm:$0xff]
      %v177 = vld [vmem:[%s166 + $0x18] sm:$0xff]
      %v178 = vld [vmem:[%s1] sm:$0xff]
      %v179 = vld [vmem:[%s1 + $0x8] sm:$0xff]
      %vm180 = vcmask 130048
      %v182 = vsel %vm180, %v174, 0
      %v185 = vsel %vm180, %v175, 0
      %v188 = vsel %vm180, %v176, 0
      %v191 = vsel %vm180, %v177, 0
      %193 = vmatpush.msra.mxu0 0.0
      %194 = vmatpush.msra.mxu0 0.0
      %195 = vmatpush.msra.mxu0 0.0
      %196 = vmatpush.msra.mxu0 0.0
      %197 = vmatpush.msra.mxu0 0.0
      %198 = vmatpush.msra.mxu0 0.0
      %199 = vmatpush.msra.mxu0 0.0
      %200 = vmatpush.msra.mxu0 0.0
      %201 = vmatpush.msra.mxu0 0.0
      %202 = vmatpush.msra.mxu0 0.0
      %203 = vmatpush.msra.mxu0 0.0
      %204 = vmatpush.msra.mxu0 0.0
      %205 = vmatpush.msra.mxu0 0.0
      %206 = vmatpush.msra.mxu0 0.0
      %v207 = vand.u32 %v179, 4294901760
      %208 = vmatpush.msra.mxu0 %v207
      %v209 = vand.u32 %v178, 4294901760
      %210 = vmatpush.msra.mxu0 %v209
      %v211 = vand.u32 %v182, 4294901760
      %v212 = vsub.f32 %v182, %v211
      %v213 = vand.u32 %v212, 4294901760
      %v214 = vsub.f32 %v212, %v213
      %v215 = vand.u32 %v214, 4294901760
      %216 = vmatmul.f32.gmra.mxu0 %v215
      %v217 = vpop.f32.mrf.mxu0
      %v218 = vadd.f32 0.0, %v217
      %v219 = vand.u32 %v185, 4294901760
      %v220 = vsub.f32 %v185, %v219
      %v221 = vand.u32 %v220, 4294901760
      %v222 = vsub.f32 %v220, %v221
      %v223 = vand.u32 %v222, 4294901760
      %224 = vmatmul.f32.gmra.mxu0 %v223
      %v225 = vpop.f32.mrf.mxu0
      %v226 = vadd.f32 0.0, %v225
      %v227 = vand.u32 %v188, 4294901760
      %v228 = vsub.f32 %v188, %v227
      %v229 = vand.u32 %v228, 4294901760
      %v230 = vsub.f32 %v228, %v229
      %v231 = vand.u32 %v230, 4294901760
      %232 = vmatmul.f32.gmra.mxu0 %v231
      %v233 = vpop.f32.mrf.mxu0
      %v234 = vadd.f32 0.0, %v233
      %v235 = vand.u32 %v191, 4294901760
      %v236 = vsub.f32 %v191, %v235
      %v237 = vand.u32 %v236, 4294901760
      %v238 = vsub.f32 %v236, %v237
      %v239 = vand.u32 %v238, 4294901760
      %240 = vmatmul.f32.gmra.mxu0 %v239
      %v241 = vpop.f32.mrf.mxu0
      %v242 = vadd.f32 0.0, %v241
      %243 = vdwg.mxu0
      %244 = vmatpush.msra.mxu0 0.0
      %245 = vmatpush.msra.mxu0 0.0
      %246 = vmatpush.msra.mxu0 0.0
      %247 = vmatpush.msra.mxu0 0.0
      %248 = vmatpush.msra.mxu0 0.0
      %249 = vmatpush.msra.mxu0 0.0
      %250 = vmatpush.msra.mxu0 0.0
      %251 = vmatpush.msra.mxu0 0.0
      %252 = vmatpush.msra.mxu0 0.0
      %253 = vmatpush.msra.mxu0 0.0
      %254 = vmatpush.msra.mxu0 0.0
      %255 = vmatpush.msra.mxu0 0.0
      %256 = vmatpush.msra.mxu0 0.0
      %257 = vmatpush.msra.mxu0 0.0
      %v258 = vand.u32 %v179, 4294901760
      %v259 = vsub.f32 %v179, %v258
      %v260 = vand.u32 %v259, 4294901760
      %v261 = vsub.f32 %v259, %v260
      %v262 = vand.u32 %v261, 4294901760
      %263 = vmatpush.msra.mxu0 %v262
      %v264 = vand.u32 %v178, 4294901760
      %v265 = vsub.f32 %v178, %v264
      %v266 = vand.u32 %v265, 4294901760
      %v267 = vsub.f32 %v265, %v266
      %v268 = vand.u32 %v267, 4294901760
      %269 = vmatpush.msra.mxu0 %v268
      %v270 = vand.u32 %v182, 4294901760
      %271 = vmatmul.f32.gmra.mxu0 %v270
      %v272 = vpop.f32.mrf.mxu0
      %v273 = vadd.f32 %v218, %v272
      %v274 = vand.u32 %v185, 4294901760
      %275 = vmatmul.f32.gmra.mxu0 %v274
      %v276 = vpop.f32.mrf.mxu0
      %v277 = vadd.f32 %v226, %v276
      %v278 = vand.u32 %v188, 4294901760
      %279 = vmatmul.f32.gmra.mxu0 %v278
      %v280 = vpop.f32.mrf.mxu0
      %v281 = vadd.f32 %v234, %v280
      %v282 = vand.u32 %v191, 4294901760
      %283 = vmatmul.f32.gmra.mxu0 %v282
      %v284 = vpop.f32.mrf.mxu0
      %v285 = vadd.f32 %v242, %v284
      %286 = vdwg.mxu0
      %287 = vmatpush.msra.mxu0 0.0
      %288 = vmatpush.msra.mxu0 0.0
      %289 = vmatpush.msra.mxu0 0.0
      %290 = vmatpush.msra.mxu0 0.0
      %291 = vmatpush.msra.mxu0 0.0
      %292 = vmatpush.msra.mxu0 0.0
      %293 = vmatpush.msra.mxu0 0.0
      %294 = vmatpush.msra.mxu0 0.0
      %295 = vmatpush.msra.mxu0 0.0
      %296 = vmatpush.msra.mxu0 0.0
      %297 = vmatpush.msra.mxu0 0.0
      %298 = vmatpush.msra.mxu0 0.0
      %299 = vmatpush.msra.mxu0 0.0
      %300 = vmatpush.msra.mxu0 0.0
      %v301 = vand.u32 %v179, 4294901760
      %v302 = vsub.f32 %v179, %v301
      %303 = vmatpush.msra.mxu0 %v302
      %v304 = vand.u32 %v178, 4294901760
      %v305 = vsub.f32 %v178, %v304
      %306 = vmatpush.msra.mxu0 %v305
      %v307 = vand.u32 %v182, 4294901760
      %v308 = vsub.f32 %v182, %v307
      %309 = vmatmul.f32.gmra.mxu0 %v308
      %v310 = vpop.f32.mrf.mxu0
      %v311 = vadd.f32 %v273, %v310
      %v312 = vand.u32 %v185, 4294901760
      %v313 = vsub.f32 %v185, %v312
      %314 = vmatmul.f32.gmra.mxu0 %v313
      %v315 = vpop.f32.mrf.mxu0
      %v316 = vadd.f32 %v277, %v315
      %v317 = vand.u32 %v188, 4294901760
      %v318 = vsub.f32 %v188, %v317
      %319 = vmatmul.f32.gmra.mxu0 %v318
      %v320 = vpop.f32.mrf.mxu0
      %v321 = vadd.f32 %v281, %v320
      %v322 = vand.u32 %v191, 4294901760
      %v323 = vsub.f32 %v191, %v322
      %324 = vmatmul.f32.gmra.mxu0 %v323
      %v325 = vpop.f32.mrf.mxu0
      %v326 = vadd.f32 %v285, %v325
      %327 = vdwg.mxu0
      %328 = vmatpush.msra.mxu0 0.0
      %329 = vmatpush.msra.mxu0 0.0
      %330 = vmatpush.msra.mxu0 0.0
      %331 = vmatpush.msra.mxu0 0.0
      %332 = vmatpush.msra.mxu0 0.0
      %333 = vmatpush.msra.mxu0 0.0
      %334 = vmatpush.msra.mxu0 0.0
      %335 = vmatpush.msra.mxu0 0.0
      %336 = vmatpush.msra.mxu0 0.0
      %337 = vmatpush.msra.mxu0 0.0
      %338 = vmatpush.msra.mxu0 0.0
      %339 = vmatpush.msra.mxu0 0.0
      %340 = vmatpush.msra.mxu0 0.0
      %341 = vmatpush.msra.mxu0 0.0
      %v342 = vand.u32 %v179, 4294901760
      %343 = vmatpush.msra.mxu0 %v342
      %v344 = vand.u32 %v178, 4294901760
      %345 = vmatpush.msra.mxu0 %v344
      %v346 = vand.u32 %v182, 4294901760
      %v347 = vsub.f32 %v182, %v346
      %v348 = vand.u32 %v347, 4294901760
      %349 = vmatmul.f32.gmra.mxu0 %v348
      %v350 = vpop.f32.mrf.mxu0
      %v351 = vadd.f32 %v311, %v350
      %v352 = vand.u32 %v185, 4294901760
      %v353 = vsub.f32 %v185, %v352
      %v354 = vand.u32 %v353, 4294901760
      %355 = vmatmul.f32.gmra.mxu0 %v354
      %v356 = vpop.f32.mrf.mxu0
      %v357 = vadd.f32 %v316, %v356
      %v358 = vand.u32 %v188, 4294901760
      %v359 = vsub.f32 %v188, %v358
      %v360 = vand.u32 %v359, 4294901760
      %361 = vmatmul.f32.gmra.mxu0 %v360
      %v362 = vpop.f32.mrf.mxu0
      %v363 = vadd.f32 %v321, %v362
      %v364 = vand.u32 %v191, 4294901760
      %v365 = vsub.f32 %v191, %v364
      %v366 = vand.u32 %v365, 4294901760
      %367 = vmatmul.f32.gmra.mxu0 %v366
      %v368 = vpop.f32.mrf.mxu0
      %v369 = vadd.f32 %v326, %v368
      %370 = vdwg.mxu0
      %371 = vmatpush.msra.mxu0 0.0
      %372 = vmatpush.msra.mxu0 0.0
      %373 = vmatpush.msra.mxu0 0.0
      %374 = vmatpush.msra.mxu0 0.0
      %375 = vmatpush.msra.mxu0 0.0
      %376 = vmatpush.msra.mxu0 0.0
      %377 = vmatpush.msra.mxu0 0.0
      %378 = vmatpush.msra.mxu0 0.0
      %379 = vmatpush.msra.mxu0 0.0
      %380 = vmatpush.msra.mxu0 0.0
      %381 = vmatpush.msra.mxu0 0.0
      %382 = vmatpush.msra.mxu0 0.0
      %383 = vmatpush.msra.mxu0 0.0
      %384 = vmatpush.msra.mxu0 0.0
      %v385 = vand.u32 %v179, 4294901760
      %v386 = vsub.f32 %v179, %v385
      %v387 = vand.u32 %v386, 4294901760
      %388 = vmatpush.msra.mxu0 %v387
      %v389 = vand.u32 %v178, 4294901760
      %v390 = vsub.f32 %v178, %v389
      %v391 = vand.u32 %v390, 4294901760
      %392 = vmatpush.msra.mxu0 %v391
      %v393 = vand.u32 %v182, 4294901760
      %394 = vmatmul.f32.gmra.mxu0 %v393
      %v395 = vpop.f32.mrf.mxu0
      %v396 = vadd.f32 %v351, %v395
      %v397 = vand.u32 %v185, 4294901760
      %398 = vmatmul.f32.gmra.mxu0 %v397
      %v399 = vpop.f32.mrf.mxu0
      %v400 = vadd.f32 %v357, %v399
      %v401 = vand.u32 %v188, 4294901760
      %402 = vmatmul.f32.gmra.mxu0 %v401
      %v403 = vpop.f32.mrf.mxu0
      %v404 = vadd.f32 %v363, %v403
      %v405 = vand.u32 %v191, 4294901760
      %406 = vmatmul.f32.gmra.mxu0 %v405
      %v407 = vpop.f32.mrf.mxu0
      %v408 = vadd.f32 %v369, %v407
      %409 = vdwg.mxu0
      %410 = vmatpush.msra.mxu0 0.0
      %411 = vmatpush.msra.mxu0 0.0
      %412 = vmatpush.msra.mxu0 0.0
      %413 = vmatpush.msra.mxu0 0.0
      %414 = vmatpush.msra.mxu0 0.0
      %415 = vmatpush.msra.mxu0 0.0
      %416 = vmatpush.msra.mxu0 0.0
      %417 = vmatpush.msra.mxu0 0.0
      %418 = vmatpush.msra.mxu0 0.0
      %419 = vmatpush.msra.mxu0 0.0
      %420 = vmatpush.msra.mxu0 0.0
      %421 = vmatpush.msra.mxu0 0.0
      %422 = vmatpush.msra.mxu0 0.0
      %423 = vmatpush.msra.mxu0 0.0
      %v424 = vand.u32 %v179, 4294901760
      %425 = vmatpush.msra.mxu0 %v424
      %v426 = vand.u32 %v178, 4294901760
      %427 = vmatpush.msra.mxu0 %v426
      %v428 = vand.u32 %v182, 4294901760
      %429 = vmatmul.f32.gmra.mxu0 %v428
      %v430 = vpop.f32.mrf.mxu0
      %v431 = vadd.f32 %v396, %v430
      %v432 = vand.u32 %v185, 4294901760
      %433 = vmatmul.f32.gmra.mxu0 %v432
      %v434 = vpop.f32.mrf.mxu0
      %v435 = vadd.f32 %v400, %v434
      %v436 = vand.u32 %v188, 4294901760
      %437 = vmatmul.f32.gmra.mxu0 %v436
      %v438 = vpop.f32.mrf.mxu0
      %v439 = vadd.f32 %v404, %v438
      %v440 = vand.u32 %v191, 4294901760
      %441 = vmatmul.f32.gmra.mxu0 %v440
      %v442 = vpop.f32.mrf.mxu0
      %v443 = vadd.f32 %v408, %v442
      %444 = vdwg.mxu0
      %v445 = vld [vmem:[%s0] sm:$0xff]
      %v446 = vrot.slane %v431, 4
      %vm447 = vcmask 1047556
      %v448 = vsel %vm447, 0.0, %v446
      %v450 = vunpack.c.l.s4 1983009808
      %v451 = vunpack.c.0.s8 %v450
      %v452 = vperm.slane %v431, %v451
      %v454 = vunpack.c.l.s4 1983009808
      %v455 = vunpack.c.0.s8 %v454
      %v456 = vperm.slane %v448, %v455
      %v457 = vrot.slane %v439, 4
      %v458 = vsel %vm447, 0.0, %v457
      %v460 = vunpack.c.l.s4 1983009808
      %v461 = vunpack.c.0.s8 %v460
      %v462 = vperm.slane %v439, %v461
      %v464 = vunpack.c.l.s4 1983009808
      %v465 = vunpack.c.0.s8 %v464
      %v466 = vperm.slane %v458, %v465
      %v467 = vrot.slane %v462, 4
      %v468 = vsel %vm447, %v467, %v452
      %v469 = vrot.slane %v452, 4
      %v470 = vsel %vm447, %v462, %v469
      %v472 = vunpack.c.l.s4 1934713408
      %v473 = vunpack.c.0.s8 %v472
      %v474 = vperm.slane %v468, %v473
      %v476 = vunpack.c.l.s4 1934713408
      %v477 = vunpack.c.0.s8 %v476
      %v478 = vperm.slane %v470, %v477
      %v479 = vrot.slane %v466, 4
      %v480 = vsel %vm447, %v479, %v456
      %v481 = vrot.slane %v456, 4
      %v482 = vsel %vm447, %v466, %v481
      %v484 = vunpack.c.l.s4 1934713408
      %v485 = vunpack.c.0.s8 %v484
      %v486 = vperm.slane %v480, %v485
      %v488 = vunpack.c.l.s4 1934713408
      %v489 = vunpack.c.0.s8 %v488
      %v490 = vperm.slane %v482, %v489
      %v491 = vrot.slane %v474, 4
      %v492 = vsel %vm447, 0.0, %v491
      %v493 = vrot.slane %v478, 4
      %v494 = vsel %vm447, 0.0, %v493
      %v495 = vrot.slane %v486, 4
      %v496 = vsel %vm447, 0.0, %v495
      %v497 = vrot.slane %v490, 4
      %v498 = vsel %vm447, 0.0, %v497
      %v499 = vrot.slane %v435, 4
      %v500 = vsel %vm447, 0.0, %v499
      %v502 = vunpack.c.l.s4 1983009808
      %v503 = vunpack.c.0.s8 %v502
      %v504 = vperm.slane %v435, %v503
      %v506 = vunpack.c.l.s4 1983009808
      %v507 = vunpack.c.0.s8 %v506
      %v508 = vperm.slane %v500, %v507
      %v509 = vrot.slane %v443, 4
      %v510 = vsel %vm447, 0.0, %v509
      %v512 = vunpack.c.l.s4 1983009808
      %v513 = vunpack.c.0.s8 %v512
      %v514 = vperm.slane %v443, %v513
      %v516 = vunpack.c.l.s4 1983009808
      %v517 = vunpack.c.0.s8 %v516
      %v518 = vperm.slane %v510, %v517
      %v519 = vrot.slane %v514, 4
      %v520 = vsel %vm447, %v519, %v504
      %v521 = vrot.slane %v504, 4
      %v522 = vsel %vm447, %v514, %v521
      %v524 = vunpack.c.l.s4 1934713408
      %v525 = vunpack.c.0.s8 %v524
      %v526 = vperm.slane %v520, %v525
      %v528 = vunpack.c.l.s4 1934713408
      %v529 = vunpack.c.0.s8 %v528
      %v530 = vperm.slane %v522, %v529
      %v531 = vrot.slane %v518, 4
      %v532 = vsel %vm447, %v531, %v508
      %v533 = vrot.slane %v508, 4
      %v534 = vsel %vm447, %v518, %v533
      %v536 = vunpack.c.l.s4 1934713408
      %v537 = vunpack.c.0.s8 %v536
      %v538 = vperm.slane %v532, %v537
      %v540 = vunpack.c.l.s4 1934713408
      %v541 = vunpack.c.0.s8 %v540
      %v542 = vperm.slane %v534, %v541
      %v543 = vrot.slane %v526, 4
      %v544 = vsel %vm447, 0.0, %v543
      %v545 = vrot.slane %v530, 4
      %v546 = vsel %vm447, 0.0, %v545
      %v547 = vrot.slane %v538, 4
      %v548 = vsel %vm447, 0.0, %v547
      %v549 = vrot.slane %v542, 4
      %v550 = vsel %vm447, 0.0, %v549
      %v551 = vsel %vm447, %v493, %v474
      %v553 = vunpack.c.l.s4 1983009808
      %v554 = vunpack.c.0.s8 %v553
      %v555 = vperm.slane %v551, %v554
      %v556 = vrot.slane %v494, 4
      %v557 = vsel %vm447, %v556, %v492
      %v559 = vunpack.c.l.s4 1983009808
      %v560 = vunpack.c.0.s8 %v559
      %v561 = vperm.slane %v557, %v560
      %v562 = vsel %vm447, %v497, %v486
      %v564 = vunpack.c.l.s4 1983009808
      %v565 = vunpack.c.0.s8 %v564
      %v566 = vperm.slane %v562, %v565
      %v567 = vrot.slane %v498, 4
      %v568 = vsel %vm447, %v567, %v496
      %v570 = vunpack.c.l.s4 1983009808
      %v571 = vunpack.c.0.s8 %v570
      %v572 = vperm.slane %v568, %v571
      %v573 = vrot.slane %v561, 4
      %v574 = vsel %vm447, %v573, %v555
      %v576 = vunpack.c.l.s4 1934713408
      %v577 = vunpack.c.0.s8 %v576
      %v578 = vperm.slane %v574, %v577
      %v579 = vrot.slane %v572, 4
      %v580 = vsel %vm447, %v579, %v566
      %v582 = vunpack.c.l.s4 1934713408
      %v583 = vunpack.c.0.s8 %v582
      %v584 = vperm.slane %v580, %v583
      %v585 = vrot.slane %v584, 4
      %v586 = vsel %vm447, %v585, %v578
      %v587 = vrot.slane %v578, 4
      %v588 = vsel %vm447, %v584, %v587
      %v589 = vsel %vm447, %v545, %v526
      %v591 = vunpack.c.l.s4 1983009808
      %v592 = vunpack.c.0.s8 %v591
      %v593 = vperm.slane %v589, %v592
      %v594 = vrot.slane %v546, 4
      %v595 = vsel %vm447, %v594, %v544
      %v597 = vunpack.c.l.s4 1983009808
      %v598 = vunpack.c.0.s8 %v597
      %v599 = vperm.slane %v595, %v598
      %v600 = vsel %vm447, %v549, %v538
      %v602 = vunpack.c.l.s4 1983009808
      %v603 = vunpack.c.0.s8 %v602
      %v604 = vperm.slane %v600, %v603
      %v605 = vrot.slane %v550, 4
      %v606 = vsel %vm447, %v605, %v548
      %v608 = vunpack.c.l.s4 1983009808
      %v609 = vunpack.c.0.s8 %v608
      %v610 = vperm.slane %v606, %v609
      %v611 = vrot.slane %v599, 4
      %v612 = vsel %vm447, %v611, %v593
      %v614 = vunpack.c.l.s4 1934713408
      %v615 = vunpack.c.0.s8 %v614
      %v616 = vperm.slane %v612, %v615
      %v617 = vrot.slane %v610, 4
      %v618 = vsel %vm447, %v617, %v604
      %v620 = vunpack.c.l.s4 1934713408
      %v621 = vunpack.c.0.s8 %v620
      %v622 = vperm.slane %v618, %v621
      %v623 = vrot.slane %v622, 4
      %v624 = vsel %vm447, %v623, %v616
      %v625 = vrot.slane %v616, 4
      %v626 = vsel %vm447, %v622, %v625
      %629 = vrot.lane.b32.xlu0 %v588, 8
      %v630 = vpop.permute.xlu0 %629
      %631 = vrot.lane.b32.xlu0 %v626, 8
      %v632 = vpop.permute.xlu0 %631
      %vm635 = vcmask 64512
      %v636 = vsel %vm635, %v586, %v630
      %v637 = vsel %vm635, %v624, %v632
      %v639 = vsel %vm180, %v445, 0
      %641 = vmatpush.msra.mxu0 0.0
      %642 = vmatpush.msra.mxu0 0.0
      %643 = vmatpush.msra.mxu0 0.0
      %644 = vmatpush.msra.mxu0 0.0
      %645 = vmatpush.msra.mxu0 0.0
      %646 = vmatpush.msra.mxu0 0.0
      %647 = vmatpush.msra.mxu0 0.0
      %648 = vmatpush.msra.mxu0 0.0
      %649 = vmatpush.msra.mxu0 0.0
      %650 = vmatpush.msra.mxu0 0.0
      %651 = vmatpush.msra.mxu0 0.0
      %652 = vmatpush.msra.mxu0 0.0
      %653 = vmatpush.msra.mxu0 0.0
      %654 = vmatpush.msra.mxu0 0.0
      %v655 = vand.u32 %v637, 4294901760
      %656 = vmatpush.msra.mxu0 %v655
      %v657 = vand.u32 %v636, 4294901760
      %658 = vmatpush.msra.mxu0 %v657
      %v659 = vand.u32 %v639, 4294901760
      %v660 = vsub.f32 %v639, %v659
      %v661 = vand.u32 %v660, 4294901760
      %v662 = vsub.f32 %v660, %v661
      %v663 = vand.u32 %v662, 4294901760
      %664 = vmatmul.f32.gmra.mxu0 %v663
      %v665 = vpop.f32.mrf.mxu0
      %v666 = vadd.f32 0.0, %v665
      %667 = vdwg.mxu0
      %668 = vmatpush.msra.mxu0 0.0
      %669 = vmatpush.msra.mxu0 0.0
      %670 = vmatpush.msra.mxu0 0.0
      %671 = vmatpush.msra.mxu0 0.0
      %672 = vmatpush.msra.mxu0 0.0
      %673 = vmatpush.msra.mxu0 0.0
      %674 = vmatpush.msra.mxu0 0.0
      %675 = vmatpush.msra.mxu0 0.0
      %676 = vmatpush.msra.mxu0 0.0
      %677 = vmatpush.msra.mxu0 0.0
      %678 = vmatpush.msra.mxu0 0.0
      %679 = vmatpush.msra.mxu0 0.0
      %680 = vmatpush.msra.mxu0 0.0
      %681 = vmatpush.msra.mxu0 0.0
      %v682 = vand.u32 %v637, 4294901760
      %v683 = vsub.f32 %v637, %v682
      %v684 = vand.u32 %v683, 4294901760
      %v685 = vsub.f32 %v683, %v684
      %v686 = vand.u32 %v685, 4294901760
      %687 = vmatpush.msra.mxu0 %v686
      %v688 = vand.u32 %v636, 4294901760
      %v689 = vsub.f32 %v636, %v688
      %v690 = vand.u32 %v689, 4294901760
      %v691 = vsub.f32 %v689, %v690
      %v692 = vand.u32 %v691, 4294901760
      %693 = vmatpush.msra.mxu0 %v692
      %v694 = vand.u32 %v639, 4294901760
      %695 = vmatmul.f32.gmra.mxu0 %v694
      %v696 = vpop.f32.mrf.mxu0
      %v697 = vadd.f32 %v666, %v696
      %698 = vdwg.mxu0
      %699 = vmatpush.msra.mxu0 0.0
      %700 = vmatpush.msra.mxu0 0.0
      %701 = vmatpush.msra.mxu0 0.0
      %702 = vmatpush.msra.mxu0 0.0
      %703 = vmatpush.msra.mxu0 0.0
      %704 = vmatpush.msra.mxu0 0.0
      %705 = vmatpush.msra.mxu0 0.0
      %706 = vmatpush.msra.mxu0 0.0
      %707 = vmatpush.msra.mxu0 0.0
      %708 = vmatpush.msra.mxu0 0.0
      %709 = vmatpush.msra.mxu0 0.0
      %710 = vmatpush.msra.mxu0 0.0
      %711 = vmatpush.msra.mxu0 0.0
      %712 = vmatpush.msra.mxu0 0.0
      %v713 = vand.u32 %v637, 4294901760
      %v714 = vsub.f32 %v637, %v713
      %715 = vmatpush.msra.mxu0 %v714
      %v716 = vand.u32 %v636, 4294901760
      %v717 = vsub.f32 %v636, %v716
      %718 = vmatpush.msra.mxu0 %v717
      %v719 = vand.u32 %v639, 4294901760
      %v720 = vsub.f32 %v639, %v719
      %721 = vmatmul.f32.gmra.mxu0 %v720
      %v722 = vpop.f32.mrf.mxu0
      %v723 = vadd.f32 %v697, %v722
      %724 = vdwg.mxu0
      %725 = vmatpush.msra.mxu0 0.0
      %726 = vmatpush.msra.mxu0 0.0
      %727 = vmatpush.msra.mxu0 0.0
      %728 = vmatpush.msra.mxu0 0.0
      %729 = vmatpush.msra.mxu0 0.0
      %730 = vmatpush.msra.mxu0 0.0
      %731 = vmatpush.msra.mxu0 0.0
      %732 = vmatpush.msra.mxu0 0.0
      %733 = vmatpush.msra.mxu0 0.0
      %734 = vmatpush.msra.mxu0 0.0
      %735 = vmatpush.msra.mxu0 0.0
      %736 = vmatpush.msra.mxu0 0.0
      %737 = vmatpush.msra.mxu0 0.0
      %738 = vmatpush.msra.mxu0 0.0
      %v739 = vand.u32 %v637, 4294901760
      %740 = vmatpush.msra.mxu0 %v739
      %v741 = vand.u32 %v636, 4294901760
      %742 = vmatpush.msra.mxu0 %v741
      %v743 = vand.u32 %v639, 4294901760
      %v744 = vsub.f32 %v639, %v743
      %v745 = vand.u32 %v744, 4294901760
      %746 = vmatmul.f32.gmra.mxu0 %v745
      %v747 = vpop.f32.mrf.mxu0
      %v748 = vadd.f32 %v723, %v747
      %749 = vdwg.mxu0
      %750 = vmatpush.msra.mxu0 0.0
      %751 = vmatpush.msra.mxu0 0.0
      %752 = vmatpush.msra.mxu0 0.0
      %753 = vmatpush.msra.mxu0 0.0
      %754 = vmatpush.msra.mxu0 0.0
      %755 = vmatpush.msra.mxu0 0.0
      %756 = vmatpush.msra.mxu0 0.0
      %757 = vmatpush.msra.mxu0 0.0
      %758 = vmatpush.msra.mxu0 0.0
      %759 = vmatpush.msra.mxu0 0.0
      %760 = vmatpush.msra.mxu0 0.0
      %761 = vmatpush.msra.mxu0 0.0
      %762 = vmatpush.msra.mxu0 0.0
      %763 = vmatpush.msra.mxu0 0.0
      %v764 = vand.u32 %v637, 4294901760
      %v765 = vsub.f32 %v637, %v764
      %v766 = vand.u32 %v765, 4294901760
      %767 = vmatpush.msra.mxu0 %v766
      %v768 = vand.u32 %v636, 4294901760
      %v769 = vsub.f32 %v636, %v768
      %v770 = vand.u32 %v769, 4294901760
      %771 = vmatpush.msra.mxu0 %v770
      %v772 = vand.u32 %v639, 4294901760
      %773 = vmatmul.f32.gmra.mxu0 %v772
      %v774 = vpop.f32.mrf.mxu0
      %v775 = vadd.f32 %v748, %v774
      %776 = vdwg.mxu0
      %777 = vmatpush.msra.mxu0 0.0
      %778 = vmatpush.msra.mxu0 0.0
      %779 = vmatpush.msra.mxu0 0.0
      %780 = vmatpush.msra.mxu0 0.0
      %781 = vmatpush.msra.mxu0 0.0
      %782 = vmatpush.msra.mxu0 0.0
      %783 = vmatpush.msra.mxu0 0.0
      %784 = vmatpush.msra.mxu0 0.0
      %785 = vmatpush.msra.mxu0 0.0
      %786 = vmatpush.msra.mxu0 0.0
      %787 = vmatpush.msra.mxu0 0.0
      %788 = vmatpush.msra.mxu0 0.0
      %789 = vmatpush.msra.mxu0 0.0
      %790 = vmatpush.msra.mxu0 0.0
      %v791 = vand.u32 %v637, 4294901760
      %792 = vmatpush.msra.mxu0 %v791
      %v793 = vand.u32 %v636, 4294901760
      %794 = vmatpush.msra.mxu0 %v793
      %v795 = vand.u32 %v639, 4294901760
      %796 = vmatmul.f32.gmra.mxu0 %v795
      %v797 = vpop.f32.mrf.mxu0
      %v798 = vadd.f32 %v775, %v797
      %799 = vdwg.mxu0
      %801 = vrot.lane.b32.xlu0 %v798, 120
      %v802 = vpop.permute.xlu0 %801
      %v804 = vrot.slane %v798, 4
      %v805 = vsel %vm447, 0.0, %v804
      %v807 = vunpack.c.l.s4 1983009808
      %v808 = vunpack.c.0.s8 %v807
      %v809 = vperm.slane %v798, %v808
      %v811 = vunpack.c.l.s4 1983009808
      %v812 = vunpack.c.0.s8 %v811
      %v813 = vperm.slane %v805, %v812
      %v814 = vrot.slane %v802, 4
      %v815 = vsel %vm447, 0.0, %v814
      %v817 = vunpack.c.l.s4 1983009808
      %v818 = vunpack.c.0.s8 %v817
      %v819 = vperm.slane %v802, %v818
      %v821 = vunpack.c.l.s4 1983009808
      %v822 = vunpack.c.0.s8 %v821
      %v823 = vperm.slane %v815, %v822
      %v824 = vrot.slane %v819, 4
      %v825 = vsel %vm447, %v824, %v809
      %v826 = vrot.slane %v809, 4
      %v827 = vsel %vm447, %v819, %v826
      %v829 = vunpack.c.l.s4 1934713408
      %v830 = vunpack.c.0.s8 %v829
      %v831 = vperm.slane %v825, %v830
      %v833 = vunpack.c.l.s4 1934713408
      %v834 = vunpack.c.0.s8 %v833
      %v835 = vperm.slane %v827, %v834
      %v836 = vrot.slane %v823, 4
      %v837 = vsel %vm447, %v836, %v813
      %v838 = vrot.slane %v813, 4
      %v839 = vsel %vm447, %v823, %v838
      %v841 = vunpack.c.l.s4 1934713408
      %v842 = vunpack.c.0.s8 %v841
      %v843 = vperm.slane %v837, %v842
      %v845 = vunpack.c.l.s4 1934713408
      %v846 = vunpack.c.0.s8 %v845
      %v847 = vperm.slane %v839, %v846
      %v848 = vrot.slane %v831, 4
      %v849 = vsel %vm447, 0.0, %v848
      %v850 = vrot.slane %v835, 4
      %v851 = vsel %vm447, 0.0, %v850
      %v852 = vrot.slane %v843, 4
      %v853 = vsel %vm447, 0.0, %v852
      %v854 = vrot.slane %v847, 4
      %v855 = vsel %vm447, 0.0, %v854
      %v856 = vsel %vm447, %v850, %v831
      %v858 = vunpack.c.l.s4 1983009808
      %v859 = vunpack.c.0.s8 %v858
      %v860 = vperm.slane %v856, %v859
      %v861 = vrot.slane %v851, 4
      %v862 = vsel %vm447, %v861, %v849
      %v864 = vunpack.c.l.s4 1983009808
      %v865 = vunpack.c.0.s8 %v864
      %v866 = vperm.slane %v862, %v865
      %v867 = vsel %vm447, %v854, %v843
      %v869 = vunpack.c.l.s4 1983009808
      %v870 = vunpack.c.0.s8 %v869
      %v871 = vperm.slane %v867, %v870
      %v872 = vrot.slane %v855, 4
      %v873 = vsel %vm447, %v872, %v853
      %v875 = vunpack.c.l.s4 1983009808
      %v876 = vunpack.c.0.s8 %v875
      %v877 = vperm.slane %v873, %v876
      %v878 = vrot.slane %v866, 4
      %v879 = vsel %vm447, %v878, %v860
      %v881 = vunpack.c.l.s4 1934713408
      %v882 = vunpack.c.0.s8 %v881
      %v883 = vperm.slane %v879, %v882
      %v884 = vrot.slane %v877, 4
      %v885 = vsel %vm447, %v884, %v871
      %v887 = vunpack.c.l.s4 1934713408
      %v888 = vunpack.c.0.s8 %v887
      %v889 = vperm.slane %v885, %v888
      %v890 = vrot.slane %v889, 4
      %v891 = vsel %vm447, %v890, %v883
      %v892 = vrot.slane %v883, 4
      %v893 = vsel %vm447, %v889, %v892
      %894 = vst.msk [vmem:[%s172] sm:$0xff] %vm635, %v891
      %895 = vst.msk [vmem:[%s172 + $0x8] sm:$0xff] %vm635, %v893
      %s896 = smul.u32 2, %s14
      %p897 = scmp.lt.s32.totalorder %s896, 7
      %s898 = scalar_select %p897, %s896, 7
      %s899 = smul.addr %s898, 8
      %s900 = scalar_lea.vmem %s3, %s899
      // Predicated region
      $region33: #{tpu_custom_call.1} parent=31 // pred_check
        %p901 = pneg %p100
      $region34: #{tpu_custom_call.1} parent=31 // pred_check_branch
        %903 = sbr.rel (%p901) target = $region36
      $region35: #{tpu_custom_call.1} parent=31 // pred_region
        %s904 = smul.u32 2, %s14
      $region36: #{tpu_custom_call.1} parent=31 // pred_fallthru
        _
    $region32: #{tpu_custom_call.1} parent=5 // pred_fallthru
      _
    %p905 = scmp.le.s32.totalorder 2, %s9
    // Predicated region
    $region37: #{tpu_custom_call.1} parent=5 // pred_check
      %p906 = pneg %p905
    $region38: #{tpu_custom_call.1} parent=5 // pred_check_branch
      %908 = sbr.rel (%p906) target = $region40
    $region39: #{tpu_custom_call.1} parent=5 // pred_region
      %s909 = ssub.s32 %s9, 2
      // Predicated region
      $region41: #{tpu_custom_call.1} parent=39 // pred_check
        %p910 = pneg %p106
      $region42: #{tpu_custom_call.1} parent=39 // pred_check_branch
        %912 = sbr.rel (%p910) target = $region44
      $region43: #{tpu_custom_call.1} parent=39 // pred_region
        %s913 = smul.u32 2, %s15
        %p914 = scmp.lt.s32.totalorder %s913, 7
        %s915 = scalar_select %p914, %s913, 7
        %s916 = smul.addr %s915, 8
        %s917 = scalar_lea.vmem %s3, %s916
      $region44: #{tpu_custom_call.1} parent=39 // pred_fallthru
        _
    $region40: #{tpu_custom_call.1} parent=5 // pred_fallthru
      _
  $region6: #{tpu_custom_call.1} parent=0 // loop_footer
    %s13 = sadd.s32 1, %s9
  $region7: #{tpu_custom_call.1} parent=0 // loop_footer_branch
    %8 = sbr.rel target = $region3
  $region8: #{tpu_custom_call.1} parent=0 // loop_exit
    _

// kernel: tpu_custom_call.1
$region0: #{tpu_custom_call.1}
  #allocation0 [shape = 'u32[]', space=smem, size = 0x4, offset = 0x4, fixed_abs, tag = 'smem constant byte address 0x4 - core index']
  #allocation1 [shape = 'u32[72,128]{1,0:T(1,128)}', space=vmem, size = 0x9000, scoped, tag = 'internal scratch']
  %s0 = inlined_call_operand.vmem [shape: f32[8,16], index: 0, kind: input, shape index: {}]
  %s1 = inlined_call_operand.vmem [shape: f32[16,8], index: 1, kind: input, shape index: {}]
  %s2 = inlined_call_operand.vmem [shape: f32[128,16], index: 2, kind: input, shape index: {}]
  %s3 = inlined_call_operand.vmem [shape: f32[64,8], index: 3, kind: output, shape index: {}]
  %s4 = sld [smem:[#allocation0]]
  $region45: #{tpu_custom_call.1} parent=0
    _
  %s6 = ssub.s32 1, %s4
  %s7 = scalar_select 0, %s6, %s4
  loop: start=0, step=1, limit=6
  $region2: #{tpu_custom_call.1} parent=0 // loop_pre_header
    _
  $region3: #{tpu_custom_call.1} parent=0 // loop_header
    %s9 = sphi 0, %s13
    %p10 = scmp.ge.s32.totalorder %s9, 6
    %s17 = sphi 0, %s17
    %s19 = sphi 0, %s17
    %s20 = sphi 0, %s19
    %s34 = sphi 0, %s20
    %s38 = sphi 0, %s38
    %s40 = sphi 0, %s38
    %s41 = sphi 0, %s40
    %s55 = sphi 0, %s41
    %s61 = sphi 0, %s63
    %s64 = sphi 0, %s61
    %s65 = sphi 0, %s64
    %s81 = sphi 0, %s65
    %s87 = sphi 0, %s89
    %s90 = sphi 0, %s87
    %s91 = sphi 0, %s90
    %s107 = sphi 0, %s91
  $region4: #{tpu_custom_call.1} parent=0 // loop_header_branch
    %12 = sbr.rel (%p10) target = $region8
  $region5: #{tpu_custom_call.1} parent=0 // loop_body
    %s14 = ssub.s32 %s9, 1
    %s15 = ssub.s32 %s9, 2
    %s16 = sadd.s32 %s9, 1
    %s18 = sadd.s32 %s17, 1
    %p21 = scmp.eq.s32.totalorder %s9, 3
    %p22 = scmp.ne.s32.totalorder %s17, %s19
    %p23 = scmp.eq.s32.totalorder %s9, 0
    %p24 = por %p22, %p23
    %p25 = scmp.ne.s32.totalorder %s17, %s19
    %p26 = scmp.eq.s32.totalorder %s14, 3
    %p27 = por %p25, %p26
    %p28 = scmp.ne.s32.totalorder %s19, %s20
    %p29 = scmp.eq.s32.totalorder %s14, 0
    %p30 = por %p28, %p29
    %p31 = scmp.ne.s32.totalorder %s19, %s20
    %p32 = scmp.eq.s32.totalorder %s15, 3
    %p33 = por %p31, %p32
    %p35 = scmp.ne.s32.totalorder %s20, %s34
    %p36 = scmp.eq.s32.totalorder %s15, 0
    %p37 = por %p35, %p36
    %s39 = sadd.s32 %s38, 1
    %p42 = scmp.eq.s32.totalorder %s9, 3
    %p43 = scmp.ne.s32.totalorder %s38, %s40
    %p44 = scmp.eq.s32.totalorder %s9, 0
    %p45 = por %p43, %p44
    %p46 = scmp.ne.s32.totalorder %s38, %s40
    %p47 = scmp.eq.s32.totalorder %s14, 3
    %p48 = por %p46, %p47
    %p49 = scmp.ne.s32.totalorder %s40, %s41
    %p50 = scmp.eq.s32.totalorder %s14, 0
    %p51 = por %p49, %p50
    %p52 = scmp.ne.s32.totalorder %s40, %s41
    %p53 = scmp.eq.s32.totalorder %s15, 3
    %p54 = por %p52, %p53
    %p56 = scmp.ne.s32.totalorder %s41, %s55
    %p57 = scmp.eq.s32.totalorder %s15, 0
    %p58 = por %p56, %p57
    %s59 = ssub.s32 %s9, %s16
    %p60 = scmp.eq.s32.totalorder %s59, 0
    %s62 = sadd.s32 %s61, 1
    %s63 = scalar_select %p60, %s61, %s62
    %p66 = pneg %p60
    %p67 = scmp.eq.s32.totalorder %s9, 3
    %p68 = por %p66, %p67
    %p69 = scmp.ne.s32.totalorder %s61, %s64
    %p70 = scmp.eq.s32.totalorder %s9, 0
    %p71 = por %p69, %p70
    %p72 = scmp.ne.s32.totalorder %s61, %s64
    %p73 = scmp.eq.s32.totalorder %s14, 3
    %p74 = por %p72, %p73
    %p75 = scmp.ne.s32.totalorder %s64, %s65
    %p76 = scmp.eq.s32.totalorder %s14, 0
    %p77 = por %p75, %p76
    %p78 = scmp.ne.s32.totalorder %s64, %s65
    %p79 = scmp.eq.s32.totalorder %s15, 3
    %p80 = por %p78, %p79
    %p82 = scmp.ne.s32.totalorder %s65, %s81
    %p83 = scmp.eq.s32.totalorder %s15, 0
    %p84 = por %p82, %p83
    %s85 = ssub.s32 %s9, %s16
    %p86 = scmp.eq.s32.totalorder %s85, 0
    %s88 = sadd.s32 %s87, 1
    %s89 = scalar_select %p86, %s87, %s88
    %p92 = pneg %p86
    %p93 = scmp.eq.s32.totalorder %s9, 3
    %p94 = por %p92, %p93
    %p95 = scmp.ne.s32.totalorder %s87, %s90
    %p96 = scmp.eq.s32.totalorder %s9, 0
    %p97 = por %p95, %p96
    %p98 = scmp.ne.s32.totalorder %s87, %s90
    %p99 = scmp.eq.s32.totalorder %s14, 3
    %p100 = por %p98, %p99
    %p101 = scmp.ne.s32.totalorder %s90, %s91
    %p102 = scmp.eq.s32.totalorder %s14, 0
    %p103 = por %p101, %p102
    %p104 = scmp.ne.s32.totalorder %s90, %s91
    %p105 = scmp.eq.s32.totalorder %s15, 3
    %p106 = por %p104, %p105
    %p108 = scmp.ne.s32.totalorder %s91, %s107
    %p109 = scmp.eq.s32.totalorder %s15, 0
    %p110 = por %p108, %p109
    %p111 = scmp.le.s32.totalorder 1, %s9
    %p112 = scmp.lt.s32.totalorder %s9, 5
    %p113 = pnand %p111, %p112
    %p114 = pneg %p113
    // Predicated region
    $region9: #{tpu_custom_call.1} parent=5 // pred_check
      _
    $region10: #{tpu_custom_call.1} parent=5 // pred_check_branch
      %116 = sbr.rel (%p113) target = $region12
    $region11: #{tpu_custom_call.1} parent=5 // pred_region
      %s117 = ssub.s32 %s9, 1
      // Predicated region
      $region13: #{tpu_custom_call.1} parent=11 // pred_check
        %p118 = pneg %p30
      $region14: #{tpu_custom_call.1} parent=11 // pred_check_branch
        %120 = sbr.rel (%p118) target = $region16
      $region15: #{tpu_custom_call.1} parent=11 // pred_region
        _
      $region16: #{tpu_custom_call.1} parent=11 // pred_fallthru
        _
      // Predicated region
      $region17: #{tpu_custom_call.1} parent=11 // pred_check
        %p121 = pneg %p51
      $region18: #{tpu_custom_call.1} parent=11 // pred_check_branch
        %123 = sbr.rel (%p121) target = $region20
      $region19: #{tpu_custom_call.1} parent=11 // pred_region
        _
      $region20: #{tpu_custom_call.1} parent=11 // pred_fallthru
        _
    $region12: #{tpu_custom_call.1} parent=5 // pred_fallthru
      _
    %p124 = scmp.lt.s32.totalorder %s9, 4
    // Predicated region
    $region21: #{tpu_custom_call.1} parent=5 // pred_check
      %p125 = pneg %p124
    $region22: #{tpu_custom_call.1} parent=5 // pred_check_branch
      %127 = sbr.rel (%p125) target = $region24
    $region23: #{tpu_custom_call.1} parent=5 // pred_region
      // Predicated region
      $region25: #{tpu_custom_call.1} parent=23 // pred_check
        %p128 = pneg %p71
      $region26: #{tpu_custom_call.1} parent=23 // pred_check_branch
        %130 = sbr.rel (%p128) target = $region28
      $region27: #{tpu_custom_call.1} parent=23 // pred_region
        %s131 = smul.u32 4, %s9
        %p132 = scmp.lt.s32.totalorder %s131, 15
        %s133 = scalar_select %p132, %s131, 15
        %s134 = smul.addr %s133, 8
        %s135 = scalar_lea.vmem %s2, %s134
        %s136 = smul.u32 4, %s9
      $region28: #{tpu_custom_call.1} parent=23 // pred_fallthru
        _
    $region24: #{tpu_custom_call.1} parent=5 // pred_fallthru
      _
    %p137 = scmp.le.s32.totalorder 1, %s9
    %p138 = scmp.lt.s32.totalorder %s9, 5
    %p139 = pnand %p137, %p138
    %p140 = pneg %p139
    // Predicated region
    $region29: #{tpu_custom_call.1} parent=5 // pred_check
      _
    $region30: #{tpu_custom_call.1} parent=5 // pred_check_branch
      %142 = sbr.rel (%p139) target = $region32
    $region31: #{tpu_custom_call.1} parent=5 // pred_region
      %s143 = ssub.s32 %s9, 1
      %p144 = pneg %p30
      %p145 = pneg %p27
      %p146 = pneg %p51
      %p147 = pneg %p48
      %s148 = smul.u32 4, %s14
      %p149 = scmp.lt.s32.totalorder %s148, 15
      %s150 = scalar_select %p149, %s148, 15
      %s151 = smul.addr %s150, 8
      %s152 = scalar_lea.vmem %s2, %s151
      %p153 = pneg %p77
      %p154 = pneg %p74
      %p155 = pneg %p103
      %p156 = pneg %p100
      %s157 = smul.u32 2, %s14
      %p158 = scmp.lt.s32.totalorder %s157, 7
      %s159 = scalar_select %p158, %s157, 7
      %s160 = smul.addr %s159, 8
      %s161 = scalar_lea.vmem %s3, %s160
      %s162 = smul.u32 4, %s14
      %p163 = scmp.lt.s32.totalorder %s162, 15
      %s164 = scalar_select %p163, %s162, 15
      %s165 = smul.addr %s164, 8
      %s166 = scalar_lea.vmem %s2, %s165
      %s167 = smul.u32 4, %s14
      %s168 = smul.u32 2, %s14
      %p169 = scmp.lt.s32.totalorder %s168, 7
      %s170 = scalar_select %p169, %s168, 7
      %s171 = smul.addr %s170, 8
      %s172 = scalar_lea.vmem %s3, %s171
      %s173 = smul.u32 2, %s14
      %v174 = vld [vmem:[%s166] sm:$0xff]
      %v175 = vld [vmem:[%s166 + $0x8] sm:$0xff]
      %v176 = vld [vmem:[%s166 + $0x10] sm:$0xff]
      %v177 = vld [vmem:[%s166 + $0x18] sm:$0xff]
      %v178 = vld [vmem:[%s1] sm:$0xff]
      %v179 = vld [vmem:[%s1 + $0x8] sm:$0xff]
      %vm180 = vcmask 130048
      %v182 = vsel %vm180, %v174, 0
      %v185 = vsel %vm180, %v175, 0
      %v188 = vsel %vm180, %v176, 0
      %v191 = vsel %vm180, %v177, 0
      %193 = vmatpush.msra.mxu0 0.0
      %194 = vmatpush.msra.mxu0 0.0
      %195 = vmatpush.msra.mxu0 0.0
      %196 = vmatpush.msra.mxu0 0.0
      %197 = vmatpush.msra.mxu0 0.0
      %198 = vmatpush.msra.mxu0 0.0
      %199 = vmatpush.msra.mxu0 0.0
      %200 = vmatpush.msra.mxu0 0.0
      %201 = vmatpush.msra.mxu0 0.0
      %202 = vmatpush.msra.mxu0 0.0
      %203 = vmatpush.msra.mxu0 0.0
      %204 = vmatpush.msra.mxu0 0.0
      %205 = vmatpush.msra.mxu0 0.0
      %206 = vmatpush.msra.mxu0 0.0
      %v207 = vand.u32 %v179, 4294901760
      %208 = vmatpush.msra.mxu0 %v207
      %v209 = vand.u32 %v178, 4294901760
      %210 = vmatpush.msra.mxu0 %v209
      %v211 = vand.u32 %v182, 4294901760
      %v212 = vsub.f32 %v182, %v211
      %v213 = vand.u32 %v212, 4294901760
      %v214 = vsub.f32 %v212, %v213
      %v215 = vand.u32 %v214, 4294901760
      %216 = vmatmul.f32.gmra.mxu0 %v215
      %v217 = vpop.f32.mrf.mxu0
      %v218 = vadd.f32 0.0, %v217
      %v219 = vand.u32 %v185, 4294901760
      %v220 = vsub.f32 %v185, %v219
      %v221 = vand.u32 %v220, 4294901760
      %v222 = vsub.f32 %v220, %v221
      %v223 = vand.u32 %v222, 4294901760
      %224 = vmatmul.f32.gmra.mxu0 %v223
      %v225 = vpop.f32.mrf.mxu0
      %v226 = vadd.f32 0.0, %v225
      %v227 = vand.u32 %v188, 4294901760
      %v228 = vsub.f32 %v188, %v227
      %v229 = vand.u32 %v228, 4294901760
      %v230 = vsub.f32 %v228, %v229
      %v231 = vand.u32 %v230, 4294901760
      %232 = vmatmul.f32.gmra.mxu0 %v231
      %v233 = vpop.f32.mrf.mxu0
      %v234 = vadd.f32 0.0, %v233
      %v235 = vand.u32 %v191, 4294901760
      %v236 = vsub.f32 %v191, %v235
      %v237 = vand.u32 %v236, 4294901760
      %v238 = vsub.f32 %v236, %v237
      %v239 = vand.u32 %v238, 4294901760
      %240 = vmatmul.f32.gmra.mxu0 %v239
      %v241 = vpop.f32.mrf.mxu0
      %v242 = vadd.f32 0.0, %v241
      %243 = vdwg.mxu0
      %244 = vmatpush.msra.mxu0 0.0
      %245 = vmatpush.msra.mxu0 0.0
      %246 = vmatpush.msra.mxu0 0.0
      %247 = vmatpush.msra.mxu0 0.0
      %248 = vmatpush.msra.mxu0 0.0
      %249 = vmatpush.msra.mxu0 0.0
      %250 = vmatpush.msra.mxu0 0.0
      %251 = vmatpush.msra.mxu0 0.0
      %252 = vmatpush.msra.mxu0 0.0
      %253 = vmatpush.msra.mxu0 0.0
      %254 = vmatpush.msra.mxu0 0.0
      %255 = vmatpush.msra.mxu0 0.0
      %256 = vmatpush.msra.mxu0 0.0
      %257 = vmatpush.msra.mxu0 0.0
      %v258 = vand.u32 %v179, 4294901760
      %v259 = vsub.f32 %v179, %v258
      %v260 = vand.u32 %v259, 4294901760
      %v261 = vsub.f32 %v259, %v260
      %v262 = vand.u32 %v261, 4294901760
      %263 = vmatpush.msra.mxu0 %v262
      %v264 = vand.u32 %v178, 4294901760
      %v265 = vsub.f32 %v178, %v264
      %v266 = vand.u32 %v265, 4294901760
      %v267 = vsub.f32 %v265, %v266
      %v268 = vand.u32 %v267, 4294901760
      %269 = vmatpush.msra.mxu0 %v268
      %v270 = vand.u32 %v182, 4294901760
      %271 = vmatmul.f32.gmra.mxu0 %v270
      %v272 = vpop.f32.mrf.mxu0
      %v273 = vadd.f32 %v218, %v272
      %v274 = vand.u32 %v185, 4294901760
      %275 = vmatmul.f32.gmra.mxu0 %v274
      %v276 = vpop.f32.mrf.mxu0
      %v277 = vadd.f32 %v226, %v276
      %v278 = vand.u32 %v188, 4294901760
      %279 = vmatmul.f32.gmra.mxu0 %v278
      %v280 = vpop.f32.mrf.mxu0
      %v281 = vadd.f32 %v234, %v280
      %v282 = vand.u32 %v191, 4294901760
      %283 = vmatmul.f32.gmra.mxu0 %v282
      %v284 = vpop.f32.mrf.mxu0
      %v285 = vadd.f32 %v242, %v284
      %286 = vdwg.mxu0
      %287 = vmatpush.msra.mxu0 0.0
      %288 = vmatpush.msra.mxu0 0.0
      %289 = vmatpush.msra.mxu0 0.0
      %290 = vmatpush.msra.mxu0 0.0
      %291 = vmatpush.msra.mxu0 0.0
      %292 = vmatpush.msra.mxu0 0.0
      %293 = vmatpush.msra.mxu0 0.0
      %294 = vmatpush.msra.mxu0 0.0
      %295 = vmatpush.msra.mxu0 0.0
      %296 = vmatpush.msra.mxu0 0.0
      %297 = vmatpush.msra.mxu0 0.0
      %298 = vmatpush.msra.mxu0 0.0
      %299 = vmatpush.msra.mxu0 0.0
      %300 = vmatpush.msra.mxu0 0.0
      %v301 = vand.u32 %v179, 4294901760
      %v302 = vsub.f32 %v179, %v301
      %303 = vmatpush.msra.mxu0 %v302
      %v304 = vand.u32 %v178, 4294901760
      %v305 = vsub.f32 %v178, %v304
      %306 = vmatpush.msra.mxu0 %v305
      %v307 = vand.u32 %v182, 4294901760
      %v308 = vsub.f32 %v182, %v307
      %309 = vmatmul.f32.gmra.mxu0 %v308
      %v310 = vpop.f32.mrf.mxu0
      %v311 = vadd.f32 %v273, %v310
      %v312 = vand.u32 %v185, 4294901760
      %v313 = vsub.f32 %v185, %v312
      %314 = vmatmul.f32.gmra.mxu0 %v313
      %v315 = vpop.f32.mrf.mxu0
      %v316 = vadd.f32 %v277, %v315
      %v317 = vand.u32 %v188, 4294901760
      %v318 = vsub.f32 %v188, %v317
      %319 = vmatmul.f32.gmra.mxu0 %v318
      %v320 = vpop.f32.mrf.mxu0
      %v321 = vadd.f32 %v281, %v320
      %v322 = vand.u32 %v191, 4294901760
      %v323 = vsub.f32 %v191, %v322
      %324 = vmatmul.f32.gmra.mxu0 %v323
      %v325 = vpop.f32.mrf.mxu0
      %v326 = vadd.f32 %v285, %v325
      %327 = vdwg.mxu0
      %328 = vmatpush.msra.mxu0 0.0
      %329 = vmatpush.msra.mxu0 0.0
      %330 = vmatpush.msra.mxu0 0.0
      %331 = vmatpush.msra.mxu0 0.0
      %332 = vmatpush.msra.mxu0 0.0
      %333 = vmatpush.msra.mxu0 0.0
      %334 = vmatpush.msra.mxu0 0.0
      %335 = vmatpush.msra.mxu0 0.0
      %336 = vmatpush.msra.mxu0 0.0
      %337 = vmatpush.msra.mxu0 0.0
      %338 = vmatpush.msra.mxu0 0.0
      %339 = vmatpush.msra.mxu0 0.0
      %340 = vmatpush.msra.mxu0 0.0
      %341 = vmatpush.msra.mxu0 0.0
      %v342 = vand.u32 %v179, 4294901760
      %343 = vmatpush.msra.mxu0 %v342
      %v344 = vand.u32 %v178, 4294901760
      %345 = vmatpush.msra.mxu0 %v344
      %v346 = vand.u32 %v182, 4294901760
      %v347 = vsub.f32 %v182, %v346
      %v348 = vand.u32 %v347, 4294901760
      %349 = vmatmul.f32.gmra.mxu0 %v348
      %v350 = vpop.f32.mrf.mxu0
      %v351 = vadd.f32 %v311, %v350
      %v352 = vand.u32 %v185, 4294901760
      %v353 = vsub.f32 %v185, %v352
      %v354 = vand.u32 %v353, 4294901760
      %355 = vmatmul.f32.gmra.mxu0 %v354
      %v356 = vpop.f32.mrf.mxu0
      %v357 = vadd.f32 %v316, %v356
      %v358 = vand.u32 %v188, 4294901760
      %v359 = vsub.f32 %v188, %v358
      %v360 = vand.u32 %v359, 4294901760
      %361 = vmatmul.f32.gmra.mxu0 %v360
      %v362 = vpop.f32.mrf.mxu0
      %v363 = vadd.f32 %v321, %v362
      %v364 = vand.u32 %v191, 4294901760
      %v365 = vsub.f32 %v191, %v364
      %v366 = vand.u32 %v365, 4294901760
      %367 = vmatmul.f32.gmra.mxu0 %v366
      %v368 = vpop.f32.mrf.mxu0
      %v369 = vadd.f32 %v326, %v368
      %370 = vdwg.mxu0
      %371 = vmatpush.msra.mxu0 0.0
      %372 = vmatpush.msra.mxu0 0.0
      %373 = vmatpush.msra.mxu0 0.0
      %374 = vmatpush.msra.mxu0 0.0
      %375 = vmatpush.msra.mxu0 0.0
      %376 = vmatpush.msra.mxu0 0.0
      %377 = vmatpush.msra.mxu0 0.0
      %378 = vmatpush.msra.mxu0 0.0
      %379 = vmatpush.msra.mxu0 0.0
      %380 = vmatpush.msra.mxu0 0.0
      %381 = vmatpush.msra.mxu0 0.0
      %382 = vmatpush.msra.mxu0 0.0
      %383 = vmatpush.msra.mxu0 0.0
      %384 = vmatpush.msra.mxu0 0.0
      %v385 = vand.u32 %v179, 4294901760
      %v386 = vsub.f32 %v179, %v385
      %v387 = vand.u32 %v386, 4294901760
      %388 = vmatpush.msra.mxu0 %v387
      %v389 = vand.u32 %v178, 4294901760
      %v390 = vsub.f32 %v178, %v389
      %v391 = vand.u32 %v390, 4294901760
      %392 = vmatpush.msra.mxu0 %v391
      %v393 = vand.u32 %v182, 4294901760
      %394 = vmatmul.f32.gmra.mxu0 %v393
      %v395 = vpop.f32.mrf.mxu0
      %v396 = vadd.f32 %v351, %v395
      %v397 = vand.u32 %v185, 4294901760
      %398 = vmatmul.f32.gmra.mxu0 %v397
      %v399 = vpop.f32.mrf.mxu0
      %v400 = vadd.f32 %v357, %v399
      %v401 = vand.u32 %v188, 4294901760
      %402 = vmatmul.f32.gmra.mxu0 %v401
      %v403 = vpop.f32.mrf.mxu0
      %v404 = vadd.f32 %v363, %v403
      %v405 = vand.u32 %v191, 4294901760
      %406 = vmatmul.f32.gmra.mxu0 %v405
      %v407 = vpop.f32.mrf.mxu0
      %v408 = vadd.f32 %v369, %v407
      %409 = vdwg.mxu0
      %410 = vmatpush.msra.mxu0 0.0
      %411 = vmatpush.msra.mxu0 0.0
      %412 = vmatpush.msra.mxu0 0.0
      %413 = vmatpush.msra.mxu0 0.0
      %414 = vmatpush.msra.mxu0 0.0
      %415 = vmatpush.msra.mxu0 0.0
      %416 = vmatpush.msra.mxu0 0.0
      %417 = vmatpush.msra.mxu0 0.0
      %418 = vmatpush.msra.mxu0 0.0
      %419 = vmatpush.msra.mxu0 0.0
      %420 = vmatpush.msra.mxu0 0.0
      %421 = vmatpush.msra.mxu0 0.0
      %422 = vmatpush.msra.mxu0 0.0
      %423 = vmatpush.msra.mxu0 0.0
      %v424 = vand.u32 %v179, 4294901760
      %425 = vmatpush.msra.mxu0 %v424
      %v426 = vand.u32 %v178, 4294901760
      %427 = vmatpush.msra.mxu0 %v426
      %v428 = vand.u32 %v182, 4294901760
      %429 = vmatmul.f32.gmra.mxu0 %v428
      %v430 = vpop.f32.mrf.mxu0
      %v431 = vadd.f32 %v396, %v430
      %v432 = vand.u32 %v185, 4294901760
      %433 = vmatmul.f32.gmra.mxu0 %v432
      %v434 = vpop.f32.mrf.mxu0
      %v435 = vadd.f32 %v400, %v434
      %v436 = vand.u32 %v188, 4294901760
      %437 = vmatmul.f32.gmra.mxu0 %v436
      %v438 = vpop.f32.mrf.mxu0
      %v439 = vadd.f32 %v404, %v438
      %v440 = vand.u32 %v191, 4294901760
      %441 = vmatmul.f32.gmra.mxu0 %v440
      %v442 = vpop.f32.mrf.mxu0
      %v443 = vadd.f32 %v408, %v442
      %444 = vdwg.mxu0
      %v445 = vld [vmem:[%s0] sm:$0xff]
      %v447 = vsel %vm180, %v445, 0
      %449 = vmatpush.msra.mxu0 0.0
      %450 = vmatpush.msra.mxu0 0.0
      %451 = vmatpush.msra.mxu0 0.0
      %452 = vmatpush.msra.mxu0 0.0
      %453 = vmatpush.msra.mxu0 0.0
      %454 = vmatpush.msra.mxu0 0.0
      %455 = vmatpush.msra.mxu0 0.0
      %456 = vmatpush.msra.mxu0 0.0
      %457 = vmatpush.msra.mxu0 0.0
      %458 = vmatpush.msra.mxu0 0.0
      %459 = vmatpush.msra.mxu0 0.0
      %460 = vmatpush.msra.mxu0 0.0
      %461 = vmatpush.msra.mxu0 0.0
      %462 = vmatpush.msra.mxu0 0.0
      %v463 = vand.u32 %v435, 4294901760
      %464 = vmatpush.msra.mxu0 %v463
      %v465 = vand.u32 %v431, 4294901760
      %466 = vmatpush.msra.mxu0 %v465
      %v467 = vand.u32 %v447, 4294901760
      %v468 = vsub.f32 %v447, %v467
      %v469 = vand.u32 %v468, 4294901760
      %v470 = vsub.f32 %v468, %v469
      %v471 = vand.u32 %v470, 4294901760
      %472 = vmatmul.f32.gmra.mxu0 %v471
      %v473 = vpop.f32.mrf.mxu0
      %v474 = vadd.f32 0.0, %v473
      %475 = vdwg.mxu0
      %476 = vmatpush.msra.mxu0 0.0
      %477 = vmatpush.msra.mxu0 0.0
      %478 = vmatpush.msra.mxu0 0.0
      %479 = vmatpush.msra.mxu0 0.0
      %480 = vmatpush.msra.mxu0 0.0
      %481 = vmatpush.msra.mxu0 0.0
      %482 = vmatpush.msra.mxu0 0.0
      %483 = vmatpush.msra.mxu0 0.0
      %484 = vmatpush.msra.mxu0 0.0
      %485 = vmatpush.msra.mxu0 0.0
      %486 = vmatpush.msra.mxu0 0.0
      %487 = vmatpush.msra.mxu0 0.0
      %488 = vmatpush.msra.mxu0 0.0
      %489 = vmatpush.msra.mxu0 0.0
      %v490 = vand.u32 %v435, 4294901760
      %v491 = vsub.f32 %v435, %v490
      %v492 = vand.u32 %v491, 4294901760
      %v493 = vsub.f32 %v491, %v492
      %v494 = vand.u32 %v493, 4294901760
      %495 = vmatpush.msra.mxu0 %v494
      %v496 = vand.u32 %v431, 4294901760
      %v497 = vsub.f32 %v431, %v496
      %v498 = vand.u32 %v497, 4294901760
      %v499 = vsub.f32 %v497, %v498
      %v500 = vand.u32 %v499, 4294901760
      %501 = vmatpush.msra.mxu0 %v500
      %v502 = vand.u32 %v447, 4294901760
      %503 = vmatmul.f32.gmra.mxu0 %v502
      %v504 = vpop.f32.mrf.mxu0
      %v505 = vadd.f32 %v474, %v504
      %506 = vdwg.mxu0
      %507 = vmatpush.msra.mxu0 0.0
      %508 = vmatpush.msra.mxu0 0.0
      %509 = vmatpush.msra.mxu0 0.0
      %510 = vmatpush.msra.mxu0 0.0
      %511 = vmatpush.msra.mxu0 0.0
      %512 = vmatpush.msra.mxu0 0.0
      %513 = vmatpush.msra.mxu0 0.0
      %514 = vmatpush.msra.mxu0 0.0
      %515 = vmatpush.msra.mxu0 0.0
      %516 = vmatpush.msra.mxu0 0.0
      %517 = vmatpush.msra.mxu0 0.0
      %518 = vmatpush.msra.mxu0 0.0
      %519 = vmatpush.msra.mxu0 0.0
      %520 = vmatpush.msra.mxu0 0.0
      %v521 = vand.u32 %v435, 4294901760
      %v522 = vsub.f32 %v435, %v521
      %523 = vmatpush.msra.mxu0 %v522
      %v524 = vand.u32 %v431, 4294901760
      %v525 = vsub.f32 %v431, %v524
      %526 = vmatpush.msra.mxu0 %v525
      %v527 = vand.u32 %v447, 4294901760
      %v528 = vsub.f32 %v447, %v527
      %529 = vmatmul.f32.gmra.mxu0 %v528
      %v530 = vpop.f32.mrf.mxu0
      %v531 = vadd.f32 %v505, %v530
      %532 = vdwg.mxu0
      %533 = vmatpush.msra.mxu0 0.0
      %534 = vmatpush.msra.mxu0 0.0
      %535 = vmatpush.msra.mxu0 0.0
      %536 = vmatpush.msra.mxu0 0.0
      %537 = vmatpush.msra.mxu0 0.0
      %538 = vmatpush.msra.mxu0 0.0
      %539 = vmatpush.msra.mxu0 0.0
      %540 = vmatpush.msra.mxu0 0.0
      %541 = vmatpush.msra.mxu0 0.0
      %542 = vmatpush.msra.mxu0 0.0
      %543 = vmatpush.msra.mxu0 0.0
      %544 = vmatpush.msra.mxu0 0.0
      %545 = vmatpush.msra.mxu0 0.0
      %546 = vmatpush.msra.mxu0 0.0
      %v547 = vand.u32 %v435, 4294901760
      %548 = vmatpush.msra.mxu0 %v547
      %v549 = vand.u32 %v431, 4294901760
      %550 = vmatpush.msra.mxu0 %v549
      %v551 = vand.u32 %v447, 4294901760
      %v552 = vsub.f32 %v447, %v551
      %v553 = vand.u32 %v552, 4294901760
      %554 = vmatmul.f32.gmra.mxu0 %v553
      %v555 = vpop.f32.mrf.mxu0
      %v556 = vadd.f32 %v531, %v555
      %557 = vdwg.mxu0
      %558 = vmatpush.msra.mxu0 0.0
      %559 = vmatpush.msra.mxu0 0.0
      %560 = vmatpush.msra.mxu0 0.0
      %561 = vmatpush.msra.mxu0 0.0
      %562 = vmatpush.msra.mxu0 0.0
      %563 = vmatpush.msra.mxu0 0.0
      %564 = vmatpush.msra.mxu0 0.0
      %565 = vmatpush.msra.mxu0 0.0
      %566 = vmatpush.msra.mxu0 0.0
      %567 = vmatpush.msra.mxu0 0.0
      %568 = vmatpush.msra.mxu0 0.0
      %569 = vmatpush.msra.mxu0 0.0
      %570 = vmatpush.msra.mxu0 0.0
      %571 = vmatpush.msra.mxu0 0.0
      %v572 = vand.u32 %v435, 4294901760
      %v573 = vsub.f32 %v435, %v572
      %v574 = vand.u32 %v573, 4294901760
      %575 = vmatpush.msra.mxu0 %v574
      %v576 = vand.u32 %v431, 4294901760
      %v577 = vsub.f32 %v431, %v576
      %v578 = vand.u32 %v577, 4294901760
      %579 = vmatpush.msra.mxu0 %v578
      %v580 = vand.u32 %v447, 4294901760
      %581 = vmatmul.f32.gmra.mxu0 %v580
      %v582 = vpop.f32.mrf.mxu0
      %v583 = vadd.f32 %v556, %v582
      %584 = vdwg.mxu0
      %585 = vmatpush.msra.mxu0 0.0
      %586 = vmatpush.msra.mxu0 0.0
      %587 = vmatpush.msra.mxu0 0.0
      %588 = vmatpush.msra.mxu0 0.0
      %589 = vmatpush.msra.mxu0 0.0
      %590 = vmatpush.msra.mxu0 0.0
      %591 = vmatpush.msra.mxu0 0.0
      %592 = vmatpush.msra.mxu0 0.0
      %593 = vmatpush.msra.mxu0 0.0
      %594 = vmatpush.msra.mxu0 0.0
      %595 = vmatpush.msra.mxu0 0.0
      %596 = vmatpush.msra.mxu0 0.0
      %597 = vmatpush.msra.mxu0 0.0
      %598 = vmatpush.msra.mxu0 0.0
      %v599 = vand.u32 %v435, 4294901760
      %600 = vmatpush.msra.mxu0 %v599
      %v601 = vand.u32 %v431, 4294901760
      %602 = vmatpush.msra.mxu0 %v601
      %v603 = vand.u32 %v447, 4294901760
      %604 = vmatmul.f32.gmra.mxu0 %v603
      %v605 = vpop.f32.mrf.mxu0
      %v606 = vadd.f32 %v583, %v605
      %607 = vdwg.mxu0
      %vm608 = vcmask 64512
      %609 = vst.msk [vmem:[%s172] sm:$0xff] %vm608, %v606
      %610 = vmatpush.msra.mxu0 0.0
      %611 = vmatpush.msra.mxu0 0.0
      %612 = vmatpush.msra.mxu0 0.0
      %613 = vmatpush.msra.mxu0 0.0
      %614 = vmatpush.msra.mxu0 0.0
      %615 = vmatpush.msra.mxu0 0.0
      %616 = vmatpush.msra.mxu0 0.0
      %617 = vmatpush.msra.mxu0 0.0
      %618 = vmatpush.msra.mxu0 0.0
      %619 = vmatpush.msra.mxu0 0.0
      %620 = vmatpush.msra.mxu0 0.0
      %621 = vmatpush.msra.mxu0 0.0
      %622 = vmatpush.msra.mxu0 0.0
      %623 = vmatpush.msra.mxu0 0.0
      %v624 = vand.u32 %v443, 4294901760
      %625 = vmatpush.msra.mxu0 %v624
      %v626 = vand.u32 %v439, 4294901760
      %627 = vmatpush.msra.mxu0 %v626
      %v628 = vand.u32 %v447, 4294901760
      %v629 = vsub.f32 %v447, %v628
      %v630 = vand.u32 %v629, 4294901760
      %v631 = vsub.f32 %v629, %v630
      %v632 = vand.u32 %v631, 4294901760
      %633 = vmatmul.f32.gmra.mxu0 %v632
      %v634 = vpop.f32.mrf.mxu0
      %v635 = vadd.f32 0.0, %v634
      %636 = vdwg.mxu0
      %637 = vmatpush.msra.mxu0 0.0
      %638 = vmatpush.msra.mxu0 0.0
      %639 = vmatpush.msra.mxu0 0.0
      %640 = vmatpush.msra.mxu0 0.0
      %641 = vmatpush.msra.mxu0 0.0
      %642 = vmatpush.msra.mxu0 0.0
      %643 = vmatpush.msra.mxu0 0.0
      %644 = vmatpush.msra.mxu0 0.0
      %645 = vmatpush.msra.mxu0 0.0
      %646 = vmatpush.msra.mxu0 0.0
      %647 = vmatpush.msra.mxu0 0.0
      %648 = vmatpush.msra.mxu0 0.0
      %649 = vmatpush.msra.mxu0 0.0
      %650 = vmatpush.msra.mxu0 0.0
      %v651 = vand.u32 %v443, 4294901760
      %v652 = vsub.f32 %v443, %v651
      %v653 = vand.u32 %v652, 4294901760
      %v654 = vsub.f32 %v652, %v653
      %v655 = vand.u32 %v654, 4294901760
      %656 = vmatpush.msra.mxu0 %v655
      %v657 = vand.u32 %v439, 4294901760
      %v658 = vsub.f32 %v439, %v657
      %v659 = vand.u32 %v658, 4294901760
      %v660 = vsub.f32 %v658, %v659
      %v661 = vand.u32 %v660, 4294901760
      %662 = vmatpush.msra.mxu0 %v661
      %v663 = vand.u32 %v447, 4294901760
      %664 = vmatmul.f32.gmra.mxu0 %v663
      %v665 = vpop.f32.mrf.mxu0
      %v666 = vadd.f32 %v635, %v665
      %667 = vdwg.mxu0
      %668 = vmatpush.msra.mxu0 0.0
      %669 = vmatpush.msra.mxu0 0.0
      %670 = vmatpush.msra.mxu0 0.0
      %671 = vmatpush.msra.mxu0 0.0
      %672 = vmatpush.msra.mxu0 0.0
      %673 = vmatpush.msra.mxu0 0.0
      %674 = vmatpush.msra.mxu0 0.0
      %675 = vmatpush.msra.mxu0 0.0
      %676 = vmatpush.msra.mxu0 0.0
      %677 = vmatpush.msra.mxu0 0.0
      %678 = vmatpush.msra.mxu0 0.0
      %679 = vmatpush.msra.mxu0 0.0
      %680 = vmatpush.msra.mxu0 0.0
      %681 = vmatpush.msra.mxu0 0.0
      %v682 = vand.u32 %v443, 4294901760
      %v683 = vsub.f32 %v443, %v682
      %684 = vmatpush.msra.mxu0 %v683
      %v685 = vand.u32 %v439, 4294901760
      %v686 = vsub.f32 %v439, %v685
      %687 = vmatpush.msra.mxu0 %v686
      %v688 = vand.u32 %v447, 4294901760
      %v689 = vsub.f32 %v447, %v688
      %690 = vmatmul.f32.gmra.mxu0 %v689
      %v691 = vpop.f32.mrf.mxu0
      %v692 = vadd.f32 %v666, %v691
      %693 = vdwg.mxu0
      %694 = vmatpush.msra.mxu0 0.0
      %695 = vmatpush.msra.mxu0 0.0
      %696 = vmatpush.msra.mxu0 0.0
      %697 = vmatpush.msra.mxu0 0.0
      %698 = vmatpush.msra.mxu0 0.0
      %699 = vmatpush.msra.mxu0 0.0
      %700 = vmatpush.msra.mxu0 0.0
      %701 = vmatpush.msra.mxu0 0.0
      %702 = vmatpush.msra.mxu0 0.0
      %703 = vmatpush.msra.mxu0 0.0
      %704 = vmatpush.msra.mxu0 0.0
      %705 = vmatpush.msra.mxu0 0.0
      %706 = vmatpush.msra.mxu0 0.0
      %707 = vmatpush.msra.mxu0 0.0
      %v708 = vand.u32 %v443, 4294901760
      %709 = vmatpush.msra.mxu0 %v708
      %v710 = vand.u32 %v439, 4294901760
      %711 = vmatpush.msra.mxu0 %v710
      %v712 = vand.u32 %v447, 4294901760
      %v713 = vsub.f32 %v447, %v712
      %v714 = vand.u32 %v713, 4294901760
      %715 = vmatmul.f32.gmra.mxu0 %v714
      %v716 = vpop.f32.mrf.mxu0
      %v717 = vadd.f32 %v692, %v716
      %718 = vdwg.mxu0
      %719 = vmatpush.msra.mxu0 0.0
      %720 = vmatpush.msra.mxu0 0.0
      %721 = vmatpush.msra.mxu0 0.0
      %722 = vmatpush.msra.mxu0 0.0
      %723 = vmatpush.msra.mxu0 0.0
      %724 = vmatpush.msra.mxu0 0.0
      %725 = vmatpush.msra.mxu0 0.0
      %726 = vmatpush.msra.mxu0 0.0
      %727 = vmatpush.msra.mxu0 0.0
      %728 = vmatpush.msra.mxu0 0.0
      %729 = vmatpush.msra.mxu0 0.0
      %730 = vmatpush.msra.mxu0 0.0
      %731 = vmatpush.msra.mxu0 0.0
      %732 = vmatpush.msra.mxu0 0.0
      %v733 = vand.u32 %v443, 4294901760
      %v734 = vsub.f32 %v443, %v733
      %v735 = vand.u32 %v734, 4294901760
      %736 = vmatpush.msra.mxu0 %v735
      %v737 = vand.u32 %v439, 4294901760
      %v738 = vsub.f32 %v439, %v737
      %v739 = vand.u32 %v738, 4294901760
      %740 = vmatpush.msra.mxu0 %v739
      %v741 = vand.u32 %v447, 4294901760
      %742 = vmatmul.f32.gmra.mxu0 %v741
      %v743 = vpop.f32.mrf.mxu0
      %v744 = vadd.f32 %v717, %v743
      %745 = vdwg.mxu0
      %746 = vmatpush.msra.mxu0 0.0
      %747 = vmatpush.msra.mxu0 0.0
      %748 = vmatpush.msra.mxu0 0.0
      %749 = vmatpush.msra.mxu0 0.0
      %750 = vmatpush.msra.mxu0 0.0
      %751 = vmatpush.msra.mxu0 0.0
      %752 = vmatpush.msra.mxu0 0.0
      %753 = vmatpush.msra.mxu0 0.0
      %754 = vmatpush.msra.mxu0 0.0
      %755 = vmatpush.msra.mxu0 0.0
      %756 = vmatpush.msra.mxu0 0.0
      %757 = vmatpush.msra.mxu0 0.0
      %758 = vmatpush.msra.mxu0 0.0
      %759 = vmatpush.msra.mxu0 0.0
      %v760 = vand.u32 %v443, 4294901760
      %761 = vmatpush.msra.mxu0 %v760
      %v762 = vand.u32 %v439, 4294901760
      %763 = vmatpush.msra.mxu0 %v762
      %v764 = vand.u32 %v447, 4294901760
      %765 = vmatmul.f32.gmra.mxu0 %v764
      %v766 = vpop.f32.mrf.mxu0
      %v767 = vadd.f32 %v744, %v766
      %768 = vdwg.mxu0
      %769 = vst.msk [vmem:[%s172 + $0x8] sm:$0xff] %vm608, %v767
      %s770 = smul.u32 2, %s14
      %p771 = scmp.lt.s32.totalorder %s770, 7
      %s772 = scalar_select %p771, %s770, 7
      %s773 = smul.addr %s772, 8
      %s774 = scalar_lea.vmem %s3, %s773
      // Predicated region
      $region33: #{tpu_custom_call.1} parent=31 // pred_check
        %p775 = pneg %p100
      $region34: #{tpu_custom_call.1} parent=31 // pred_check_branch
        %777 = sbr.rel (%p775) target = $region36
      $region35: #{tpu_custom_call.1} parent=31 // pred_region
        %s778 = smul.u32 2, %s14
      $region36: #{tpu_custom_call.1} parent=31 // pred_fallthru
        _
    $region32: #{tpu_custom_call.1} parent=5 // pred_fallthru
      _
    %p779 = scmp.le.s32.totalorder 2, %s9
    // Predicated region
    $region37: #{tpu_custom_call.1} parent=5 // pred_check
      %p780 = pneg %p779
    $region38: #{tpu_custom_call.1} parent=5 // pred_check_branch
      %782 = sbr.rel (%p780) target = $region40
    $region39: #{tpu_custom_call.1} parent=5 // pred_region
      %s783 = ssub.s32 %s9, 2
      // Predicated region
      $region41: #{tpu_custom_call.1} parent=39 // pred_check
        %p784 = pneg %p106
      $region42: #{tpu_custom_call.1} parent=39 // pred_check_branch
        %786 = sbr.rel (%p784) target = $region44
      $region43: #{tpu_custom_call.1} parent=39 // pred_region
        %s787 = smul.u32 2, %s15
        %p788 = scmp.lt.s32.totalorder %s787, 7
        %s789 = scalar_select %p788, %s787, 7
        %s790 = smul.addr %s789, 8
        %s791 = scalar_lea.vmem %s3, %s790
      $region44: #{tpu_custom_call.1} parent=39 // pred_fallthru
        _
    $region40: #{tpu_custom_call.1} parent=5 // pred_fallthru
      _
  $region6: #{tpu_custom_call.1} parent=0 // loop_footer
    %s13 = sadd.s32 1, %s9
  $region7: #{tpu_custom_call.1} parent=0 // loop_footer_branch
    %8 = sbr.rel target = $region3
  $region8: #{tpu_custom_call.1} parent=0 // loop_exit
    _

</llo_original>
